<compile_context>
chip_gen: v7x
topology: tpu7x:2x2x1
jax: 0.10.0
libtpu: 0.0.40
codegen_flags: <defaults>
</compile_context>

<pallas_src>
import functools

import jax
import jax.numpy as jnp
from jax.experimental import pallas as pl
from jax.experimental.pallas import tpu as pltpu  # noqa: F401  (kept for TPU-specific tuning hooks)

# ----- opts (synthetic, small) -----
N_ATTRIBUTES = 2
N_VALUES = 4
N_INPUTS = N_ATTRIBUTES * N_VALUES      # 8
VOCAB_SIZE = 16
MAX_LEN = 4
HIDDEN = 32
EMBED = 16
BATCH = 16
PACK_W = 32                             # packed output lane width (>= VOCAB_SIZE + 3)


def rnn_sender_kernel(x_ref, wenc_ref, benc_ref, pre0_ref, wembih_ref,
                      bcell_ref, whh_ref, wout_ref, bout_ref,
                      out_ref, *, max_len, vocab):
    x = x_ref[...]                                                    # (B, N_INPUTS)
    tb = x.shape[0]
    pad = out_ref.shape[-1] - (vocab + 3)

    # Hoist loop-invariant weight / bias loads out of the unrolled decode loop.
    w_hh = whh_ref[...]                                               # (H, H)
    w_emb_ih = wembih_ref[...]                                        # (V, H)  = emb @ W_ih
    b_cell = bcell_ref[...]                                           # (1, H)  = b_ih + b_hh
    w_out = wout_ref[...]                                             # (H, V)
    b_out = bout_ref[...]                                             # (1, V)

    # hidden init: encoder Linear (no activation), as in RnnSenderReinforce
    h = jnp.dot(x, wenc_ref[...], preferred_element_type=jnp.float32) + benc_ref[...]

    lane = jax.lax.broadcasted_iota(jnp.int32, (tb, vocab), 1)        # (B, V)
    zeros_pad = jnp.zeros((tb, pad), jnp.float32)

    # Step-0 input-side contribution: sos @ W_ih + b_ih + b_hh (precomputed on host).
    inp = pre0_ref[...]                                               # (1, H), broadcasts over B

    for t in range(max_len):
        # vanilla RNNCell: h = tanh(e @ W_ih + b_ih + h @ W_hh + b_hh)
        h = jnp.tanh(inp + jnp.dot(h, w_hh, preferred_element_type=jnp.float32))

        # hidden_to_output + log_softmax
        logits = jnp.dot(h, w_out, preferred_element_type=jnp.float32) + b_out
        m = jnp.max(logits, axis=-1, keepdims=True)
        lse = m + jnp.log(jnp.sum(jnp.exp(logits - m), axis=-1, keepdims=True))
        log_probs = logits - lse                                      # (B, V)

        # entropy of the categorical distribution
        ent = -jnp.sum(jnp.exp(log_probs) * log_probs, axis=-1, keepdims=True)  # (B, 1)

        # greedy decode: argmax (lowest index on ties); chosen log_prob = max
        max_lp = jnp.max(log_probs, axis=-1, keepdims=True)           # (B, 1)
        sym = jnp.min(jnp.where(log_probs == max_lp, lane, vocab),
                      axis=-1, keepdims=True)                         # (B, 1) int32

        if t + 1 < max_len:
            # next-step input contribution with the embedding folded into W_ih:
            #   emb[sym] @ W_ih + b_ih + b_hh == one_hot @ (emb @ W_ih) + b_cell
            one_hot = (lane == sym).astype(jnp.float32)               # (B, V)
            inp = jnp.dot(one_hot, w_emb_ih,
                          preferred_element_type=jnp.float32) + b_cell

        # single packed, time-major per-step store
        out_ref[t] = jnp.concatenate(
            [log_probs, sym.astype(jnp.float32), max_lp, ent, zeros_pad], axis=-1)


def init_params(key):
    ks = jax.random.split(key, 8)

    def u(k, shape, scale):
        return (jax.random.uniform(k, shape, jnp.float32) * 2.0 - 1.0) * scale

    return {
        "w_enc": u(ks[0], (N_INPUTS, HIDDEN), 0.3),
        "b_enc": u(ks[1], (1, HIDDEN), 0.1),
        "sos":   u(ks[2], (1, EMBED), 0.3),
        "emb":   u(ks[3], (VOCAB_SIZE, EMBED), 0.3),
        "w_ih":  u(ks[4], (EMBED, HIDDEN), 0.3),
        "b_ih":  jnp.zeros((1, HIDDEN), jnp.float32),
        "w_hh":  u(ks[5], (HIDDEN, HIDDEN), 0.3),
        "b_hh":  jnp.zeros((1, HIDDEN), jnp.float32),
        "w_out": u(ks[6], (HIDDEN, VOCAB_SIZE), 0.3),
        "b_out": u(ks[7], (1, VOCAB_SIZE), 0.1),
    }


def rnn_sender_bc_forward(sender_input, params):
    B = sender_input.shape[0]

    # Host-side folding (tiny one-off matmuls; shortens the in-kernel chain):
    #   w_emb_ih = emb @ W_ih            (V, H)
    #   pre0     = sos @ W_ih + b_ih + b_hh   (1, H)   -- step-0 input contribution
    #   b_cell   = b_ih + b_hh           (1, H)
    w_emb_ih = params["emb"] @ params["w_ih"]
    b_cell = params["b_ih"] + params["b_hh"]
    pre0 = params["sos"] @ params["w_ih"] + b_cell

    kernel = functools.partial(rnn_sender_kernel, max_len=MAX_LEN, vocab=VOCAB_SIZE)

    packed = pl.pallas_call(
        kernel,
        out_shape=jax.ShapeDtypeStruct((MAX_LEN, B, PACK_W), jnp.float32),
    )(sender_input, params["w_enc"], params["b_enc"], pre0, w_emb_ih,
      b_cell, params["w_hh"], params["w_out"], params["b_out"])

    # Unpack (time-major -> batch-major) in the wrapper.
    cls_tm = packed[:, :, :VOCAB_SIZE]                     # (MAX_LEN, B, V)
    seq = packed[:, :, VOCAB_SIZE].T.astype(jnp.int32)     # (B, MAX_LEN)
    logp = packed[:, :, VOCAB_SIZE + 1].T                  # (B, MAX_LEN)
    ent = packed[:, :, VOCAB_SIZE + 2].T                   # (B, MAX_LEN)

    # EOS column + PlusOneWrapper (+1 on the sampled symbols)
    zeros_i = jnp.zeros((B, 1), jnp.int32)
    zeros_f = jnp.zeros((B, 1), jnp.float32)
    sender_output = jnp.concatenate([seq, zeros_i], axis=1) + 1
    log_prob_s = jnp.concatenate([logp, zeros_f], axis=1)
    entropy_s = jnp.concatenate([ent, zeros_f], axis=1)
    # batch-major (B, MAX_LEN, V).reshape(B*MAX_LEN, V), matching the reference
    class_proba_s = jnp.transpose(cls_tm, (1, 0, 2)).reshape(B * MAX_LEN, VOCAB_SIZE)
    return sender_output, log_prob_s, entropy_s, class_proba_s, B


if __name__ == "__main__":
    key = jax.random.PRNGKey(0)
    k_param, k_attr = jax.random.split(key)

    params = init_params(k_param)

    # deterministic one-hot attribute/value input, shape (BATCH, N_ATTRIBUTES*N_VALUES)
    attrs = jax.random.randint(k_attr, (BATCH, N_ATTRIBUTES), 0, N_VALUES)
    sender_input = jax.nn.one_hot(attrs, N_VALUES, dtype=jnp.float32).reshape(
        BATCH, N_INPUTS)

    out = rnn_sender_bc_forward(sender_input, params)
    jax.block_until_ready(out[:4])

    sender_output, log_prob_s, entropy_s, class_proba_s, batch_size = out
    assert sender_output.shape == (BATCH, MAX_LEN + 1)
    assert log_prob_s.shape == (BATCH, MAX_LEN + 1)
    assert entropy_s.shape == (BATCH, MAX_LEN + 1)
    assert class_proba_s.shape == (BATCH * MAX_LEN, VOCAB_SIZE)
    assert batch_size == BATCH

    # sanity: symbols in [1, VOCAB_SIZE] with trailing EOS (= 1 after +1),
    # per-row chosen log-prob equals the row max of class_proba_s
    assert bool(jnp.all((sender_output >= 1) & (sender_output <= VOCAB_SIZE + 1)))
    assert bool(jnp.all(sender_output[:, -1] == 1))
    row_max = class_proba_s.reshape(BATCH, MAX_LEN, VOCAB_SIZE).max(-1)
    assert bool(jnp.allclose(row_max, log_prob_s[:, :MAX_LEN], atol=1e-5))

    print("KERNEL_OK")
</pallas_src>

<mosaic_0001>
module attributes {stable_mosaic.version = 11 : i64} {
  func.func @rnn_sender_kernel(%arg0: memref<16x8xf32, #tpu.memory_space<vmem>>, %arg1: memref<8x32xf32, #tpu.memory_space<vmem>>, %arg2: memref<1x32xf32, #tpu.memory_space<vmem>>, %arg3: memref<1x32xf32, #tpu.memory_space<vmem>>, %arg4: memref<16x32xf32, #tpu.memory_space<vmem>>, %arg5: memref<1x32xf32, #tpu.memory_space<vmem>>, %arg6: memref<32x32xf32, #tpu.memory_space<vmem>>, %arg7: memref<32x16xf32, #tpu.memory_space<vmem>>, %arg8: memref<1x16xf32, #tpu.memory_space<vmem>>, %arg9: memref<4x16x32xf32, #tpu.memory_space<vmem>>) attributes {dimension_semantics = [], scalar_prefetch = 0 : i64, scratch_operands = 0 : i64, tpu.core_type = #tpu.core_type<tc>} {
    %c0 = arith.constant 0 : index
    %c0_0 = arith.constant 0 : index
    %0 = vector.load %arg0[%c0, %c0_0] : memref<16x8xf32, #tpu.memory_space<vmem>>, vector<16x8xf32>
    %c0_1 = arith.constant 0 : index
    %c0_2 = arith.constant 0 : index
    %1 = vector.load %arg6[%c0_1, %c0_2] : memref<32x32xf32, #tpu.memory_space<vmem>>, vector<32x32xf32>
    %c0_3 = arith.constant 0 : index
    %c0_4 = arith.constant 0 : index
    %2 = vector.load %arg4[%c0_3, %c0_4] : memref<16x32xf32, #tpu.memory_space<vmem>>, vector<16x32xf32>
    %c0_5 = arith.constant 0 : index
    %c0_6 = arith.constant 0 : index
    %3 = vector.load %arg5[%c0_5, %c0_6] : memref<1x32xf32, #tpu.memory_space<vmem>>, vector<1x32xf32>
    %c0_7 = arith.constant 0 : index
    %c0_8 = arith.constant 0 : index
    %4 = vector.load %arg7[%c0_7, %c0_8] : memref<32x16xf32, #tpu.memory_space<vmem>>, vector<32x16xf32>
    %c0_9 = arith.constant 0 : index
    %c0_10 = arith.constant 0 : index
    %5 = vector.load %arg8[%c0_9, %c0_10] : memref<1x16xf32, #tpu.memory_space<vmem>>, vector<1x16xf32>
    %c0_11 = arith.constant 0 : index
    %c0_12 = arith.constant 0 : index
    %6 = vector.load %arg1[%c0_11, %c0_12] : memref<8x32xf32, #tpu.memory_space<vmem>>, vector<8x32xf32>
    %cst = arith.constant dense<0.000000e+00> : vector<16x32xf32>
    %7 = tpu.matmul %0, %6, %cst {dimension_numbers = #tpu.dot_dimension_numbers<[1], [0], [0], [1], [0, 0, 1, 1], [], []>} : vector<16x8xf32>, vector<8x32xf32>, vector<16x32xf32> -> vector<16x32xf32>
    %c0_13 = arith.constant 0 : index
    %c0_14 = arith.constant 0 : index
    %8 = vector.load %arg2[%c0_13, %c0_14] : memref<1x32xf32, #tpu.memory_space<vmem>>, vector<1x32xf32>
    %9 = vector.broadcast %8 : vector<1x32xf32> to vector<16x32xf32>
    %10 = arith.addf %7, %9 : vector<16x32xf32>
    %11 = tpu.iota {dimensions = array<i32: 1>} : vector<16x16xi32>
    %cst_15 = arith.constant 0.000000e+00 : f32
    %12 = vector.broadcast %cst_15 : f32 to vector<16x13xf32>
    %c0_16 = arith.constant 0 : index
    %c0_17 = arith.constant 0 : index
    %13 = vector.load %arg3[%c0_16, %c0_17] : memref<1x32xf32, #tpu.memory_space<vmem>>, vector<1x32xf32>
    %cst_18 = arith.constant dense<0.000000e+00> : vector<16x32xf32>
    %14 = tpu.matmul %10, %1, %cst_18 {dimension_numbers = #tpu.dot_dimension_numbers<[1], [0], [0], [1], [0, 0, 1, 1], [], []>} : vector<16x32xf32>, vector<32x32xf32>, vector<16x32xf32> -> vector<16x32xf32>
    %15 = vector.broadcast %13 : vector<1x32xf32> to vector<16x32xf32>
    %16 = arith.addf %15, %14 : vector<16x32xf32>
    %17 = math.tanh %16 : vector<16x32xf32>
    %cst_19 = arith.constant dense<0.000000e+00> : vector<16x16xf32>
    %18 = tpu.matmul %17, %4, %cst_19 {dimension_numbers = #tpu.dot_dimension_numbers<[1], [0], [0], [1], [0, 0, 1, 1], [], []>} : vector<16x32xf32>, vector<32x16xf32>, vector<16x16xf32> -> vector<16x16xf32>
    %19 = vector.broadcast %5 : vector<1x16xf32> to vector<16x16xf32>
    %20 = arith.addf %18, %19 : vector<16x16xf32>
    %cst_20 = arith.constant dense<0xFF800000> : vector<16xf32>
    %21 = vector.multi_reduction <maximumf>, %20, %cst_20 [1] : vector<16x16xf32> to vector<16xf32>
    %22 = vector.shape_cast %21 : vector<16xf32> to vector<16x1xf32>
    %23 = vector.broadcast %22 : vector<16x1xf32> to vector<16x16xf32>
    %24 = arith.subf %20, %23 : vector<16x16xf32>
    %25 = math.exp %24 : vector<16x16xf32>
    %cst_21 = arith.constant dense<0.000000e+00> : vector<16xf32>
    %26 = vector.multi_reduction <add>, %25, %cst_21 [1] : vector<16x16xf32> to vector<16xf32>
    %27 = vector.shape_cast %26 : vector<16xf32> to vector<16x1xf32>
    %28 = math.log %27 : vector<16x1xf32>
    %29 = arith.addf %22, %28 : vector<16x1xf32>
    %30 = vector.broadcast %29 : vector<16x1xf32> to vector<16x16xf32>
    %31 = arith.subf %20, %30 : vector<16x16xf32>
    %32 = math.exp %31 : vector<16x16xf32>
    %33 = arith.mulf %32, %31 : vector<16x16xf32>
    %cst_22 = arith.constant dense<0.000000e+00> : vector<16xf32>
    %34 = vector.multi_reduction <add>, %33, %cst_22 [1] : vector<16x16xf32> to vector<16xf32>
    %35 = vector.shape_cast %34 : vector<16xf32> to vector<16x1xf32>
    %cst_23 = arith.constant 0.000000e+00 : f32
    %36 = vector.broadcast %cst_23 : f32 to vector<16x1xf32>
    %37 = arith.subf %36, %35 : vector<16x1xf32>
    %cst_24 = arith.constant dense<0xFF800000> : vector<16xf32>
    %38 = vector.multi_reduction <maximumf>, %31, %cst_24 [1] : vector<16x16xf32> to vector<16xf32>
    %39 = vector.shape_cast %38 : vector<16xf32> to vector<16x1xf32>
    %40 = vector.broadcast %39 : vector<16x1xf32> to vector<16x16xf32>
    %41 = arith.cmpf oeq, %31, %40 : vector<16x16xf32>
    %c16_i32 = arith.constant 16 : i32
    %42 = vector.broadcast %c16_i32 : i32 to vector<16x16xi32>
    %43 = arith.select %41, %11, %42 : vector<16x16xi1>, vector<16x16xi32>
    %cst_25 = arith.constant dense<2147483647> : vector<16xi32>
    %44 = vector.multi_reduction <minsi>, %43, %cst_25 [1] : vector<16x16xi32> to vector<16xi32>
    %45 = vector.shape_cast %44 : vector<16xi32> to vector<16x1xi32>
    %46 = vector.broadcast %45 : vector<16x1xi32> to vector<16x16xi32>
    %47 = arith.cmpi eq, %11, %46 : vector<16x16xi32>
    %48 = arith.extui %47 : vector<16x16xi1> to vector<16x16xi32>
    %49 = arith.sitofp %48 : vector<16x16xi32> to vector<16x16xf32>
    %cst_26 = arith.constant dense<0.000000e+00> : vector<16x32xf32>
    %50 = tpu.matmul %49, %2, %cst_26 {dimension_numbers = #tpu.dot_dimension_numbers<[1], [0], [0], [1], [0, 0, 1, 1], [], []>} : vector<16x16xf32>, vector<16x32xf32>, vector<16x32xf32> -> vector<16x32xf32>
    %51 = vector.broadcast %3 : vector<1x32xf32> to vector<16x32xf32>
    %52 = arith.addf %50, %51 : vector<16x32xf32>
    %53 = arith.sitofp %45 : vector<16x1xi32> to vector<16x1xf32>
    %54 = tpu.concatenate %31, %53, %39, %37, %12 in 1 : vector<16x16xf32>, vector<16x1xf32>, vector<16x1xf32>, vector<16x1xf32>, vector<16x13xf32> -> vector<16x32xf32>
    %c0_27 = arith.constant 0 : index
    %c0_28 = arith.constant 0 : index
    %c0_29 = arith.constant 0 : index
    %55 = vector.load %arg9[%c0_27, %c0_28, %c0_29] : memref<4x16x32xf32, #tpu.memory_space<vmem>>, vector<1x16x32xf32>
    %56 = vector.shape_cast %55 : vector<1x16x32xf32> to vector<16x32xf32>
    %57 = vector.shape_cast %54 : vector<16x32xf32> to vector<1x16x32xf32>
    tpu.vector_store %arg9[%c0_27, %c0_28, %c0_29], %57 {strides = array<i32>} : memref<4x16x32xf32, #tpu.memory_space<vmem>>, vector<1x16x32xf32>,
    %cst_30 = arith.constant dense<0.000000e+00> : vector<16x32xf32>
    %58 = tpu.matmul %17, %1, %cst_30 {dimension_numbers = #tpu.dot_dimension_numbers<[1], [0], [0], [1], [0, 0, 1, 1], [], []>} : vector<16x32xf32>, vector<32x32xf32>, vector<16x32xf32> -> vector<16x32xf32>
    %59 = arith.addf %52, %58 : vector<16x32xf32>
    %60 = math.tanh %59 : vector<16x32xf32>
    %cst_31 = arith.constant dense<0.000000e+00> : vector<16x16xf32>
    %61 = tpu.matmul %60, %4, %cst_31 {dimension_numbers = #tpu.dot_dimension_numbers<[1], [0], [0], [1], [0, 0, 1, 1], [], []>} : vector<16x32xf32>, vector<32x16xf32>, vector<16x16xf32> -> vector<16x16xf32>
    %62 = vector.broadcast %5 : vector<1x16xf32> to vector<16x16xf32>
    %63 = arith.addf %61, %62 : vector<16x16xf32>
    %cst_32 = arith.constant dense<0xFF800000> : vector<16xf32>
    %64 = vector.multi_reduction <maximumf>, %63, %cst_32 [1] : vector<16x16xf32> to vector<16xf32>
    %65 = vector.shape_cast %64 : vector<16xf32> to vector<16x1xf32>
    %66 = vector.broadcast %65 : vector<16x1xf32> to vector<16x16xf32>
    %67 = arith.subf %63, %66 : vector<16x16xf32>
    %68 = math.exp %67 : vector<16x16xf32>
    %cst_33 = arith.constant dense<0.000000e+00> : vector<16xf32>
    %69 = vector.multi_reduction <add>, %68, %cst_33 [1] : vector<16x16xf32> to vector<16xf32>
    %70 = vector.shape_cast %69 : vector<16xf32> to vector<16x1xf32>
    %71 = math.log %70 : vector<16x1xf32>
    %72 = arith.addf %65, %71 : vector<16x1xf32>
    %73 = vector.broadcast %72 : vector<16x1xf32> to vector<16x16xf32>
    %74 = arith.subf %63, %73 : vector<16x16xf32>
    %75 = math.exp %74 : vector<16x16xf32>
    %76 = arith.mulf %75, %74 : vector<16x16xf32>
    %cst_34 = arith.constant dense<0.000000e+00> : vector<16xf32>
    %77 = vector.multi_reduction <add>, %76, %cst_34 [1] : vector<16x16xf32> to vector<16xf32>
    %78 = vector.shape_cast %77 : vector<16xf32> to vector<16x1xf32>
    %cst_35 = arith.constant 0.000000e+00 : f32
    %79 = vector.broadcast %cst_35 : f32 to vector<16x1xf32>
    %80 = arith.subf %79, %78 : vector<16x1xf32>
    %cst_36 = arith.constant dense<0xFF800000> : vector<16xf32>
    %81 = vector.multi_reduction <maximumf>, %74, %cst_36 [1] : vector<16x16xf32> to vector<16xf32>
    %82 = vector.shape_cast %81 : vector<16xf32> to vector<16x1xf32>
    %83 = vector.broadcast %82 : vector<16x1xf32> to vector<16x16xf32>
    %84 = arith.cmpf oeq, %74, %83 : vector<16x16xf32>
    %c16_i32_37 = arith.constant 16 : i32
    %85 = vector.broadcast %c16_i32_37 : i32 to vector<16x16xi32>
    %86 = arith.select %84, %11, %85 : vector<16x16xi1>, vector<16x16xi32>
    %cst_38 = arith.constant dense<2147483647> : vector<16xi32>
    %87 = vector.multi_reduction <minsi>, %86, %cst_38 [1] : vector<16x16xi32> to vector<16xi32>
    %88 = vector.shape_cast %87 : vector<16xi32> to vector<16x1xi32>
    %89 = vector.broadcast %88 : vector<16x1xi32> to vector<16x16xi32>
    %90 = arith.cmpi eq, %11, %89 : vector<16x16xi32>
    %91 = arith.extui %90 : vector<16x16xi1> to vector<16x16xi32>
    %92 = arith.sitofp %91 : vector<16x16xi32> to vector<16x16xf32>
    %cst_39 = arith.constant dense<0.000000e+00> : vector<16x32xf32>
    %93 = tpu.matmul %92, %2, %cst_39 {dimension_numbers = #tpu.dot_dimension_numbers<[1], [0], [0], [1], [0, 0, 1, 1], [], []>} : vector<16x16xf32>, vector<16x32xf32>, vector<16x32xf32> -> vector<16x32xf32>
    %94 = vector.broadcast %3 : vector<1x32xf32> to vector<16x32xf32>
    %95 = arith.addf %93, %94 : vector<16x32xf32>
    %96 = arith.sitofp %88 : vector<16x1xi32> to vector<16x1xf32>
    %97 = tpu.concatenate %74, %96, %82, %80, %12 in 1 : vector<16x16xf32>, vector<16x1xf32>, vector<16x1xf32>, vector<16x1xf32>, vector<16x13xf32> -> vector<16x32xf32>
    %c1 = arith.constant 1 : index
    %c0_40 = arith.constant 0 : index
    %c0_41 = arith.constant 0 : index
    %98 = vector.load %arg9[%c1, %c0_40, %c0_41] : memref<4x16x32xf32, #tpu.memory_space<vmem>>, vector<1x16x32xf32>
    %99 = vector.shape_cast %98 : vector<1x16x32xf32> to vector<16x32xf32>
    %100 = vector.shape_cast %97 : vector<16x32xf32> to vector<1x16x32xf32>
    tpu.vector_store %arg9[%c1, %c0_40, %c0_41], %100 {strides = array<i32>} : memref<4x16x32xf32, #tpu.memory_space<vmem>>, vector<1x16x32xf32>,
    %cst_42 = arith.constant dense<0.000000e+00> : vector<16x32xf32>
    %101 = tpu.matmul %60, %1, %cst_42 {dimension_numbers = #tpu.dot_dimension_numbers<[1], [0], [0], [1], [0, 0, 1, 1], [], []>} : vector<16x32xf32>, vector<32x32xf32>, vector<16x32xf32> -> vector<16x32xf32>
    %102 = arith.addf %95, %101 : vector<16x32xf32>
    %103 = math.tanh %102 : vector<16x32xf32>
    %cst_43 = arith.constant dense<0.000000e+00> : vector<16x16xf32>
    %104 = tpu.matmul %103, %4, %cst_43 {dimension_numbers = #tpu.dot_dimension_numbers<[1], [0], [0], [1], [0, 0, 1, 1], [], []>} : vector<16x32xf32>, vector<32x16xf32>, vector<16x16xf32> -> vector<16x16xf32>
    %105 = vector.broadcast %5 : vector<1x16xf32> to vector<16x16xf32>
    %106 = arith.addf %104, %105 : vector<16x16xf32>
    %cst_44 = arith.constant dense<0xFF800000> : vector<16xf32>
    %107 = vector.multi_reduction <maximumf>, %106, %cst_44 [1] : vector<16x16xf32> to vector<16xf32>
    %108 = vector.shape_cast %107 : vector<16xf32> to vector<16x1xf32>
    %109 = vector.broadcast %108 : vector<16x1xf32> to vector<16x16xf32>
    %110 = arith.subf %106, %109 : vector<16x16xf32>
    %111 = math.exp %110 : vector<16x16xf32>
    %cst_45 = arith.constant dense<0.000000e+00> : vector<16xf32>
    %112 = vector.multi_reduction <add>, %111, %cst_45 [1] : vector<16x16xf32> to vector<16xf32>
    %113 = vector.shape_cast %112 : vector<16xf32> to vector<16x1xf32>
    %114 = math.log %113 : vector<16x1xf32>
    %115 = arith.addf %108, %114 : vector<16x1xf32>
    %116 = vector.broadcast %115 : vector<16x1xf32> to vector<16x16xf32>
    %117 = arith.subf %106, %116 : vector<16x16xf32>
    %118 = math.exp %117 : vector<16x16xf32>
    %119 = arith.mulf %118, %117 : vector<16x16xf32>
    %cst_46 = arith.constant dense<0.000000e+00> : vector<16xf32>
    %120 = vector.multi_reduction <add>, %119, %cst_46 [1] : vector<16x16xf32> to vector<16xf32>
    %121 = vector.shape_cast %120 : vector<16xf32> to vector<16x1xf32>
    %cst_47 = arith.constant 0.000000e+00 : f32
    %122 = vector.broadcast %cst_47 : f32 to vector<16x1xf32>
    %123 = arith.subf %122, %121 : vector<16x1xf32>
    %cst_48 = arith.constant dense<0xFF800000> : vector<16xf32>
    %124 = vector.multi_reduction <maximumf>, %117, %cst_48 [1] : vector<16x16xf32> to vector<16xf32>
    %125 = vector.shape_cast %124 : vector<16xf32> to vector<16x1xf32>
    %126 = vector.broadcast %125 : vector<16x1xf32> to vector<16x16xf32>
    %127 = arith.cmpf oeq, %117, %126 : vector<16x16xf32>
    %c16_i32_49 = arith.constant 16 : i32
    %128 = vector.broadcast %c16_i32_49 : i32 to vector<16x16xi32>
    %129 = arith.select %127, %11, %128 : vector<16x16xi1>, vector<16x16xi32>
    %cst_50 = arith.constant dense<2147483647> : vector<16xi32>
    %130 = vector.multi_reduction <minsi>, %129, %cst_50 [1] : vector<16x16xi32> to vector<16xi32>
    %131 = vector.shape_cast %130 : vector<16xi32> to vector<16x1xi32>
    %132 = vector.broadcast %131 : vector<16x1xi32> to vector<16x16xi32>
    %133 = arith.cmpi eq, %11, %132 : vector<16x16xi32>
    %134 = arith.extui %133 : vector<16x16xi1> to vector<16x16xi32>
    %135 = arith.sitofp %134 : vector<16x16xi32> to vector<16x16xf32>
    %cst_51 = arith.constant dense<0.000000e+00> : vector<16x32xf32>
    %136 = tpu.matmul %135, %2, %cst_51 {dimension_numbers = #tpu.dot_dimension_numbers<[1], [0], [0], [1], [0, 0, 1, 1], [], []>} : vector<16x16xf32>, vector<16x32xf32>, vector<16x32xf32> -> vector<16x32xf32>
    %137 = vector.broadcast %3 : vector<1x32xf32> to vector<16x32xf32>
    %138 = arith.addf %136, %137 : vector<16x32xf32>
    %139 = arith.sitofp %131 : vector<16x1xi32> to vector<16x1xf32>
    %140 = tpu.concatenate %117, %139, %125, %123, %12 in 1 : vector<16x16xf32>, vector<16x1xf32>, vector<16x1xf32>, vector<16x1xf32>, vector<16x13xf32> -> vector<16x32xf32>
    %c2 = arith.constant 2 : index
    %c0_52 = arith.constant 0 : index
    %c0_53 = arith.constant 0 : index
    %141 = vector.load %arg9[%c2, %c0_52, %c0_53] : memref<4x16x32xf32, #tpu.memory_space<vmem>>, vector<1x16x32xf32>
    %142 = vector.shape_cast %141 : vector<1x16x32xf32> to vector<16x32xf32>
    %143 = vector.shape_cast %140 : vector<16x32xf32> to vector<1x16x32xf32>
    tpu.vector_store %arg9[%c2, %c0_52, %c0_53], %143 {strides = array<i32>} : memref<4x16x32xf32, #tpu.memory_space<vmem>>, vector<1x16x32xf32>,
    %cst_54 = arith.constant dense<0.000000e+00> : vector<16x32xf32>
    %144 = tpu.matmul %103, %1, %cst_54 {dimension_numbers = #tpu.dot_dimension_numbers<[1], [0], [0], [1], [0, 0, 1, 1], [], []>} : vector<16x32xf32>, vector<32x32xf32>, vector<16x32xf32> -> vector<16x32xf32>
    %145 = arith.addf %138, %144 : vector<16x32xf32>
    %146 = math.tanh %145 : vector<16x32xf32>
    %cst_55 = arith.constant dense<0.000000e+00> : vector<16x16xf32>
    %147 = tpu.matmul %146, %4, %cst_55 {dimension_numbers = #tpu.dot_dimension_numbers<[1], [0], [0], [1], [0, 0, 1, 1], [], []>} : vector<16x32xf32>, vector<32x16xf32>, vector<16x16xf32> -> vector<16x16xf32>
    %148 = vector.broadcast %5 : vector<1x16xf32> to vector<16x16xf32>
    %149 = arith.addf %147, %148 : vector<16x16xf32>
    %cst_56 = arith.constant dense<0xFF800000> : vector<16xf32>
    %150 = vector.multi_reduction <maximumf>, %149, %cst_56 [1] : vector<16x16xf32> to vector<16xf32>
    %151 = vector.shape_cast %150 : vector<16xf32> to vector<16x1xf32>
    %152 = vector.broadcast %151 : vector<16x1xf32> to vector<16x16xf32>
    %153 = arith.subf %149, %152 : vector<16x16xf32>
    %154 = math.exp %153 : vector<16x16xf32>
    %cst_57 = arith.constant dense<0.000000e+00> : vector<16xf32>
    %155 = vector.multi_reduction <add>, %154, %cst_57 [1] : vector<16x16xf32> to vector<16xf32>
    %156 = vector.shape_cast %155 : vector<16xf32> to vector<16x1xf32>
    %157 = math.log %156 : vector<16x1xf32>
    %158 = arith.addf %151, %157 : vector<16x1xf32>
    %159 = vector.broadcast %158 : vector<16x1xf32> to vector<16x16xf32>
    %160 = arith.subf %149, %159 : vector<16x16xf32>
    %161 = math.exp %160 : vector<16x16xf32>
    %162 = arith.mulf %161, %160 : vector<16x16xf32>
    %cst_58 = arith.constant dense<0.000000e+00> : vector<16xf32>
    %163 = vector.multi_reduction <add>, %162, %cst_58 [1] : vector<16x16xf32> to vector<16xf32>
    %164 = vector.shape_cast %163 : vector<16xf32> to vector<16x1xf32>
    %cst_59 = arith.constant 0.000000e+00 : f32
    %165 = vector.broadcast %cst_59 : f32 to vector<16x1xf32>
    %166 = arith.subf %165, %164 : vector<16x1xf32>
    %cst_60 = arith.constant dense<0xFF800000> : vector<16xf32>
    %167 = vector.multi_reduction <maximumf>, %160, %cst_60 [1] : vector<16x16xf32> to vector<16xf32>
    %168 = vector.shape_cast %167 : vector<16xf32> to vector<16x1xf32>
    %169 = vector.broadcast %168 : vector<16x1xf32> to vector<16x16xf32>
    %170 = arith.cmpf oeq, %160, %169 : vector<16x16xf32>
    %c16_i32_61 = arith.constant 16 : i32
    %171 = vector.broadcast %c16_i32_61 : i32 to vector<16x16xi32>
    %172 = arith.select %170, %11, %171 : vector<16x16xi1>, vector<16x16xi32>
    %cst_62 = arith.constant dense<2147483647> : vector<16xi32>
    %173 = vector.multi_reduction <minsi>, %172, %cst_62 [1] : vector<16x16xi32> to vector<16xi32>
    %174 = vector.shape_cast %173 : vector<16xi32> to vector<16x1xi32>
    %175 = arith.sitofp %174 : vector<16x1xi32> to vector<16x1xf32>
    %176 = tpu.concatenate %160, %175, %168, %166, %12 in 1 : vector<16x16xf32>, vector<16x1xf32>, vector<16x1xf32>, vector<16x1xf32>, vector<16x13xf32> -> vector<16x32xf32>
    %c3 = arith.constant 3 : index
    %c0_63 = arith.constant 0 : index
    %c0_64 = arith.constant 0 : index
    %177 = vector.load %arg9[%c3, %c0_63, %c0_64] : memref<4x16x32xf32, #tpu.memory_space<vmem>>, vector<1x16x32xf32>
    %178 = vector.shape_cast %177 : vector<1x16x32xf32> to vector<16x32xf32>
    %179 = vector.shape_cast %176 : vector<16x32xf32> to vector<1x16x32xf32>
    tpu.vector_store %arg9[%c3, %c0_63, %c0_64], %179 {strides = array<i32>} : memref<4x16x32xf32, #tpu.memory_space<vmem>>, vector<1x16x32xf32>,
    return
  }
}

</mosaic_0001>

<llo_original>
// kernel: tpu_custom_call.1
$region0: #{tpu_custom_call.1}
  #allocation0 [shape = 'u32[]', space=smem, size = 0x4, offset = 0x4, fixed_abs, tag = 'smem constant byte address 0x4 - core index']
  #allocation1 [shape = 'u32[144,128]{1,0:T(1,128)}', space=vmem, size = 0x12000, scoped, tag = 'internal scratch']
  %s0 = inlined_call_operand.vmem [shape: f32[16,8], index: 0, kind: input, shape index: {}]
  %s1 = inlined_call_operand.vmem [shape: f32[8,32], index: 1, kind: input, shape index: {}]
  %s2 = inlined_call_operand.vmem [shape: f32[1,32], index: 2, kind: input, shape index: {}]
  %s3 = inlined_call_operand.vmem [shape: f32[1,32], index: 3, kind: input, shape index: {}]
  %s4 = inlined_call_operand.vmem [shape: f32[16,32], index: 4, kind: input, shape index: {}]
  %s5 = inlined_call_operand.vmem [shape: f32[1,32], index: 5, kind: input, shape index: {}]
  %s6 = inlined_call_operand.vmem [shape: f32[32,32], index: 6, kind: input, shape index: {}]
  %s7 = inlined_call_operand.vmem [shape: f32[32,16], index: 7, kind: input, shape index: {}]
  %s8 = inlined_call_operand.vmem [shape: f32[1,16], index: 8, kind: input, shape index: {}]
  %s9 = inlined_call_operand.hbm [shape: f32[4,16,32], index: 9, kind: output, shape index: {}]
  %s10 = sld [smem:[#allocation0]]
  $region46: #{tpu_custom_call.1} parent=0
    _
  %s12 = ssub.s32 1, %s10
  %s13 = scalar_select 0, %s12, %s10
  $region1: #{tpu_custom_call.1} parent=0
    #allocation2 [shape = 'u8[32768]{0}', space=vmem, size = 0x8000, scoped, tag = 'output window, operand 0, single buffered']
    #allocation3 [shape = 's32[1]{0}', space=sflag, size = 0x4, scoped, tag = 'scoped memory for tpu_custom_call.1']
    %14 = vsyncpa [#allocation3], 0
    // Predicated region
    $region2: #{tpu_custom_call.1} parent=1 // pred_check
      _
    $region3: #{tpu_custom_call.1} parent=1 // pred_check_branch
      %16 = sbr.rel (0) target = $region5
    $region4: #{tpu_custom_call.1} parent=1 // pred_region
      _
    $region5: #{tpu_custom_call.1} parent=1 // pred_fallthru
      _
    // Predicated region
    $region6: #{tpu_custom_call.1} parent=1 // pred_check
      _
    $region7: #{tpu_custom_call.1} parent=1 // pred_check_branch
      %18 = sbr.rel (0) target = $region9
    $region8: #{tpu_custom_call.1} parent=1 // pred_region
      _
    $region9: #{tpu_custom_call.1} parent=1 // pred_fallthru
      _
    // Predicated region
    $region10: #{tpu_custom_call.1} parent=1 // pred_check
      _
    $region11: #{tpu_custom_call.1} parent=1 // pred_check_branch
      %20 = sbr.rel (0) target = $region13
    $region12: #{tpu_custom_call.1} parent=1 // pred_region
      _
    $region13: #{tpu_custom_call.1} parent=1 // pred_fallthru
      _
    // Predicated region
    $region14: #{tpu_custom_call.1} parent=1 // pred_check
      _
    $region15: #{tpu_custom_call.1} parent=1 // pred_check_branch
      %22 = sbr.rel (0) target = $region17
    $region16: #{tpu_custom_call.1} parent=1 // pred_region
      _
    $region17: #{tpu_custom_call.1} parent=1 // pred_fallthru
      _
    // Predicated region
    $region18: #{tpu_custom_call.1} parent=1 // pred_check
      _
    $region19: #{tpu_custom_call.1} parent=1 // pred_check_branch
      %24 = sbr.rel (0) target = $region21
    $region20: #{tpu_custom_call.1} parent=1 // pred_region
      _
    $region21: #{tpu_custom_call.1} parent=1 // pred_fallthru
      _
    // Predicated region
    $region22: #{tpu_custom_call.1} parent=1 // pred_check
      _
    $region23: #{tpu_custom_call.1} parent=1 // pred_check_branch
      %26 = sbr.rel (0) target = $region25
    $region24: #{tpu_custom_call.1} parent=1 // pred_region
      _
    $region25: #{tpu_custom_call.1} parent=1 // pred_fallthru
      _
    // Predicated region
    $region26: #{tpu_custom_call.1} parent=1 // pred_check
      _
    $region27: #{tpu_custom_call.1} parent=1 // pred_check_branch
      %28 = sbr.rel (0) target = $region29
    $region28: #{tpu_custom_call.1} parent=1 // pred_region
      _
    $region29: #{tpu_custom_call.1} parent=1 // pred_fallthru
      _
    // Predicated region
    $region30: #{tpu_custom_call.1} parent=1 // pred_check
      _
    $region31: #{tpu_custom_call.1} parent=1 // pred_check_branch
      %30 = sbr.rel (0) target = $region33
    $region32: #{tpu_custom_call.1} parent=1 // pred_region
      _
    $region33: #{tpu_custom_call.1} parent=1 // pred_fallthru
      _
    // Predicated region
    $region34: #{tpu_custom_call.1} parent=1 // pred_check
      _
    $region35: #{tpu_custom_call.1} parent=1 // pred_check_branch
      %32 = sbr.rel (0) target = $region37
    $region36: #{tpu_custom_call.1} parent=1 // pred_region
      _
    $region37: #{tpu_custom_call.1} parent=1 // pred_fallthru
      _
    %v33 = vld [vmem:[%s0] sm:$0xff]
    %v34 = vld [vmem:[%s0 + $0x8] sm:$0xff]
    %v35 = vld [vmem:[%s6] sm:$0xff]
    %v36 = vld [vmem:[%s6 + $0x8] sm:$0xff]
    %v37 = vld [vmem:[%s6 + $0x10] sm:$0xff]
    %v38 = vld [vmem:[%s6 + $0x18] sm:$0xff]
    %v39 = vld [vmem:[%s4] sm:$0xff]
    %v40 = vld [vmem:[%s4 + $0x8] sm:$0xff]
    %v41 = vld [vmem:[%s5] sm:$0x1]
    %v42 = vld [vmem:[%s7] sm:$0xff]
    %v43 = vld [vmem:[%s7 + $0x8] sm:$0xff]
    %v44 = vld [vmem:[%s7 + $0x10] sm:$0xff]
    %v45 = vld [vmem:[%s7 + $0x18] sm:$0xff]
    %v46 = vld [vmem:[%s8] sm:$0x1]
    %v47 = vld [vmem:[%s1] sm:$0xff]
    %v48 = vld [vmem:[%s2] sm:$0x1]
    %v50 = vlaneseq
    %v51 = vshrl.u32 %v50, 7
    %v52 = vsub.s32 0, %v51
    %v53 = vrot.slane %v48, %v52
    %vm55 = vcmask 64512
    %v57 = vsel %vm55, %v33, 0
    %v60 = vsel %vm55, %v34, 0
    %62 = vmatprep.subr.mxu0 0.0
    %63 = vmatpush1.msra.mxu0 %v47
    %64 = vmatprep.subr.mxu0 0.0
    %65 = vmatpush1.msra.mxu0 0.0
    %66 = vmatprep.subr.mxu0 0.0
    %67 = vmatpush1.msra.mxu0 0.0
    %68 = vmatprep.subr.mxu0 0.0
    %69 = vmatpush1.msra.mxu0 0.0
    %70 = vmatprep.subr.mxu0 0.0
    %71 = vmatpush1.msra.mxu0 0.0
    %72 = vmatprep.subr.mxu0 0.0
    %73 = vmatpush1.msra.mxu0 0.0
    %74 = vmatprep.subr.mxu0 0.0
    %75 = vmatpush1.msra.mxu0 0.0
    %76 = vmatprep.subr.mxu0 0.0
    %77 = vmatpush1.msra.mxu0 0.0
    %78 = vmatprep.subr.mxu0 0.0
    %79 = vmatpush1.msra.mxu0 0.0
    %80 = vmatprep.subr.mxu0 0.0
    %81 = vmatpush1.msra.mxu0 0.0
    %82 = vmatprep.subr.mxu0 0.0
    %83 = vmatpush1.msra.mxu0 0.0
    %84 = vmatprep.subr.mxu0 0.0
    %85 = vmatpush1.msra.mxu0 0.0
    %86 = vmatprep.subr.mxu0 0.0
    %87 = vmatpush1.msra.mxu0 0.0
    %88 = vmatprep.subr.mxu0 0.0
    %89 = vmatpush1.msra.mxu0 0.0
    %90 = vmatprep.subr.mxu0 0.0
    %91 = vmatpush1.msra.mxu0 0.0
    %92 = vmatprep.subr.mxu0 0.0
    %93 = vmatpush1.msra.mxu0 0.0
    %94 = vmatprep.subr.mxu0 0.0
    %95 = vmatpush1.msra.mxu0 0.0
    %96 = vmatprep.subr.mxu0 0.0
    %97 = vmatpush1.msra.mxu0 0.0
    %98 = vmatprep.subr.mxu0 0.0
    %99 = vmatpush1.msra.mxu0 0.0
    %100 = vmatprep.subr.mxu0 0.0
    %101 = vmatpush1.msra.mxu0 0.0
    %102 = vmatprep.subr.mxu0 0.0
    %103 = vmatpush1.msra.mxu0 0.0
    %104 = vmatprep.subr.mxu0 0.0
    %105 = vmatpush1.msra.mxu0 0.0
    %106 = vmatprep.subr.mxu0 0.0
    %107 = vmatpush1.msra.mxu0 0.0
    %108 = vmatprep.subr.mxu0 0.0
    %109 = vmatpush1.msra.mxu0 0.0
    %110 = vmatprep.subr.mxu0 0.0
    %111 = vmatpush1.msra.mxu0 0.0
    %112 = vmatprep.subr.mxu0 0.0
    %113 = vmatpush1.msra.mxu0 0.0
    %114 = vmatprep.subr.mxu0 0.0
    %115 = vmatpush1.msra.mxu0 0.0
    %116 = vmatprep.subr.mxu0 0.0
    %117 = vmatpush1.msra.mxu0 0.0
    %118 = vmatprep.subr.mxu0 0.0
    %119 = vmatpush1.msra.mxu0 0.0
    %120 = vmatprep.subr.mxu0 0.0
    %121 = vmatpush1.msra.mxu0 0.0
    %122 = vmatprep.subr.mxu0 0.0
    %123 = vmatpush1.msra.mxu0 0.0
    %124 = vmatprep.subr.mxu0 0.0
    %125 = vmatpush1.msra.mxu0 0.0
    %126 = vmatprep.mubr.f32.mxu0 0.0
    %127 = vmatmul.mubr.f32.gmra.mrb[0].mxu0 %v57
    %v128 = vpop.f32.mrb[0].mxu0
    %v129 = vadd.f32 %v53, %v128
    %v130 = vpop.f32.mrb[0].mxu0
    %131 = vmatprep.mubr.f32.mxu0 0.0
    %132 = vmatmul.mubr.f32.gmra.mrb[0].mxu0 %v60
    %v133 = vpop.f32.mrb[0].mxu0
    %v134 = vadd.f32 %v53, %v133
    %v135 = vpop.f32.mrb[0].mxu0
    %136 = vdwg.mxu0
    %v137 = vlaneseq
    %v138 = vand.u32 %v137, 127
    %v139 = vld [vmem:[%s3] sm:$0x1]
    %vm140 = vcmask 261120
    %v142 = vsel %vm140, %v129, 0
    %v145 = vsel %vm140, %v134, 0
    %147 = vmatprep.subr.mxu0 0.0
    %148 = vmatpush1.msra.mxu0 %v35
    %149 = vmatprep.subr.mxu0 0.0
    %150 = vmatpush1.msra.mxu0 %v36
    %151 = vmatprep.subr.mxu0 0.0
    %152 = vmatpush1.msra.mxu0 %v37
    %153 = vmatprep.subr.mxu0 0.0
    %154 = vmatpush1.msra.mxu0 %v38
    %155 = vmatprep.subr.mxu0 0.0
    %156 = vmatpush1.msra.mxu0 0.0
    %157 = vmatprep.subr.mxu0 0.0
    %158 = vmatpush1.msra.mxu0 0.0
    %159 = vmatprep.subr.mxu0 0.0
    %160 = vmatpush1.msra.mxu0 0.0
    %161 = vmatprep.subr.mxu0 0.0
    %162 = vmatpush1.msra.mxu0 0.0
    %163 = vmatprep.subr.mxu0 0.0
    %164 = vmatpush1.msra.mxu0 0.0
    %165 = vmatprep.subr.mxu0 0.0
    %166 = vmatpush1.msra.mxu0 0.0
    %167 = vmatprep.subr.mxu0 0.0
    %168 = vmatpush1.msra.mxu0 0.0
    %169 = vmatprep.subr.mxu0 0.0
    %170 = vmatpush1.msra.mxu0 0.0
    %171 = vmatprep.subr.mxu0 0.0
    %172 = vmatpush1.msra.mxu0 0.0
    %173 = vmatprep.subr.mxu0 0.0
    %174 = vmatpush1.msra.mxu0 0.0
    %175 = vmatprep.subr.mxu0 0.0
    %176 = vmatpush1.msra.mxu0 0.0
    %177 = vmatprep.subr.mxu0 0.0
    %178 = vmatpush1.msra.mxu0 0.0
    %179 = vmatprep.subr.mxu0 0.0
    %180 = vmatpush1.msra.mxu0 0.0
    %181 = vmatprep.subr.mxu0 0.0
    %182 = vmatpush1.msra.mxu0 0.0
    %183 = vmatprep.subr.mxu0 0.0
    %184 = vmatpush1.msra.mxu0 0.0
    %185 = vmatprep.subr.mxu0 0.0
    %186 = vmatpush1.msra.mxu0 0.0
    %187 = vmatprep.subr.mxu0 0.0
    %188 = vmatpush1.msra.mxu0 0.0
    %189 = vmatprep.subr.mxu0 0.0
    %190 = vmatpush1.msra.mxu0 0.0
    %191 = vmatprep.subr.mxu0 0.0
    %192 = vmatpush1.msra.mxu0 0.0
    %193 = vmatprep.subr.mxu0 0.0
    %194 = vmatpush1.msra.mxu0 0.0
    %195 = vmatprep.subr.mxu0 0.0
    %196 = vmatpush1.msra.mxu0 0.0
    %197 = vmatprep.subr.mxu0 0.0
    %198 = vmatpush1.msra.mxu0 0.0
    %199 = vmatprep.subr.mxu0 0.0
    %200 = vmatpush1.msra.mxu0 0.0
    %201 = vmatprep.subr.mxu0 0.0
    %202 = vmatpush1.msra.mxu0 0.0
    %203 = vmatprep.subr.mxu0 0.0
    %204 = vmatpush1.msra.mxu0 0.0
    %205 = vmatprep.subr.mxu0 0.0
    %206 = vmatpush1.msra.mxu0 0.0
    %207 = vmatprep.subr.mxu0 0.0
    %208 = vmatpush1.msra.mxu0 0.0
    %209 = vmatprep.subr.mxu0 0.0
    %210 = vmatpush1.msra.mxu0 0.0
    %211 = vmatprep.mubr.f32.mxu0 0.0
    %212 = vmatmul.mubr.f32.gmra.mrb[0].mxu0 %v142
    %v213 = vpop.f32.mrb[0].mxu0
    %v214 = vadd.f32 0.0, %v213
    %v215 = vpop.f32.mrb[0].mxu0
    %216 = vmatprep.mubr.f32.mxu0 0.0
    %217 = vmatmul.mubr.f32.gmra.mrb[0].mxu0 %v145
    %v218 = vpop.f32.mrb[0].mxu0
    %v219 = vadd.f32 0.0, %v218
    %v220 = vpop.f32.mrb[0].mxu0
    %221 = vdwg.mxu0
    %v223 = vlaneseq
    %v224 = vshrl.u32 %v223, 7
    %v225 = vsub.s32 0, %v224
    %v226 = vrot.slane %v139, %v225
    %v228 = vadd.f32 %v226, %v214
    %v229 = vadd.f32 %v226, %v219
    %v230 = vtanh.pop %v228
    %v231 = vtanh.pop %v229
    %v233 = vlaneseq
    %v234 = vshrl.u32 %v233, 7
    %v235 = vsub.s32 0, %v234
    %v236 = vrot.slane %v46, %v235
    %v239 = vsel %vm140, %v230, 0
    %v242 = vsel %vm140, %v231, 0
    %244 = vmatprep.subr.mxu0 0.0
    %245 = vmatpush1.msra.mxu0 %v42
    %246 = vmatprep.subr.mxu0 0.0
    %247 = vmatpush1.msra.mxu0 %v43
    %248 = vmatprep.subr.mxu0 0.0
    %249 = vmatpush1.msra.mxu0 %v44
    %250 = vmatprep.subr.mxu0 0.0
    %251 = vmatpush1.msra.mxu0 %v45
    %252 = vmatprep.subr.mxu0 0.0
    %253 = vmatpush1.msra.mxu0 0.0
    %254 = vmatprep.subr.mxu0 0.0
    %255 = vmatpush1.msra.mxu0 0.0
    %256 = vmatprep.subr.mxu0 0.0
    %257 = vmatpush1.msra.mxu0 0.0
    %258 = vmatprep.subr.mxu0 0.0
    %259 = vmatpush1.msra.mxu0 0.0
    %260 = vmatprep.subr.mxu0 0.0
    %261 = vmatpush1.msra.mxu0 0.0
    %262 = vmatprep.subr.mxu0 0.0
    %263 = vmatpush1.msra.mxu0 0.0
    %264 = vmatprep.subr.mxu0 0.0
    %265 = vmatpush1.msra.mxu0 0.0
    %266 = vmatprep.subr.mxu0 0.0
    %267 = vmatpush1.msra.mxu0 0.0
    %268 = vmatprep.subr.mxu0 0.0
    %269 = vmatpush1.msra.mxu0 0.0
    %270 = vmatprep.subr.mxu0 0.0
    %271 = vmatpush1.msra.mxu0 0.0
    %272 = vmatprep.subr.mxu0 0.0
    %273 = vmatpush1.msra.mxu0 0.0
    %274 = vmatprep.subr.mxu0 0.0
    %275 = vmatpush1.msra.mxu0 0.0
    %276 = vmatprep.subr.mxu0 0.0
    %277 = vmatpush1.msra.mxu0 0.0
    %278 = vmatprep.subr.mxu0 0.0
    %279 = vmatpush1.msra.mxu0 0.0
    %280 = vmatprep.subr.mxu0 0.0
    %281 = vmatpush1.msra.mxu0 0.0
    %282 = vmatprep.subr.mxu0 0.0
    %283 = vmatpush1.msra.mxu0 0.0
    %284 = vmatprep.subr.mxu0 0.0
    %285 = vmatpush1.msra.mxu0 0.0
    %286 = vmatprep.subr.mxu0 0.0
    %287 = vmatpush1.msra.mxu0 0.0
    %288 = vmatprep.subr.mxu0 0.0
    %289 = vmatpush1.msra.mxu0 0.0
    %290 = vmatprep.subr.mxu0 0.0
    %291 = vmatpush1.msra.mxu0 0.0
    %292 = vmatprep.subr.mxu0 0.0
    %293 = vmatpush1.msra.mxu0 0.0
    %294 = vmatprep.subr.mxu0 0.0
    %295 = vmatpush1.msra.mxu0 0.0
    %296 = vmatprep.subr.mxu0 0.0
    %297 = vmatpush1.msra.mxu0 0.0
    %298 = vmatprep.subr.mxu0 0.0
    %299 = vmatpush1.msra.mxu0 0.0
    %300 = vmatprep.subr.mxu0 0.0
    %301 = vmatpush1.msra.mxu0 0.0
    %302 = vmatprep.subr.mxu0 0.0
    %303 = vmatpush1.msra.mxu0 0.0
    %304 = vmatprep.subr.mxu0 0.0
    %305 = vmatpush1.msra.mxu0 0.0
    %306 = vmatprep.subr.mxu0 0.0
    %307 = vmatpush1.msra.mxu0 0.0
    %308 = vmatprep.mubr.f32.mxu0 0.0
    %309 = vmatmul.mubr.f32.gmra.mrb[0].mxu0 %v239
    %v310 = vpop.f32.mrb[0].mxu0
    %v311 = vadd.f32 %v236, %v310
    %v312 = vpop.f32.mrb[0].mxu0
    %313 = vmatprep.mubr.f32.mxu0 0.0
    %314 = vmatmul.mubr.f32.gmra.mrb[0].mxu0 %v242
    %v315 = vpop.f32.mrb[0].mxu0
    %v316 = vadd.f32 %v236, %v315
    %v317 = vpop.f32.mrb[0].mxu0
    %318 = vdwg.mxu0
    %vm319 = vcmask 130048
    %v320 = vsel %vm319, %v311, -inf
    %321 = vmax.xlane.f32.xlu0 %v320
    %v322 = vpop.xlane.xlu0 %321
    %v323 = vsel %vm319, %v316, -inf
    %324 = vmax.xlane.f32.xlu0 %v323
    %v325 = vpop.xlane.xlu0 %324
    %v326 = vsub.f32 %v311, %v322
    %v327 = vsub.f32 %v316, %v325
    %v328 = vmul.f32 %v326, 1.442695
    %v329 = vpow.pop %v328
    %v330 = vmul.f32 %v327, 1.442695
    %v331 = vpow.pop %v330
    %v332 = vsel %vm319, %v329, 0.0
    %333 = vadd.xlane.f32.xlu0 %v332
    %v334 = vpop.xlane.xlu0 %333
    %v335 = vsel %vm319, %v331, 0.0
    %336 = vadd.xlane.f32.xlu0 %v335
    %v337 = vpop.xlane.xlu0 %336
    %v338 = vlog2.pop %v334
    %v339 = vmul.f32 %v338, 0.6931472
    %v340 = vlog2.pop %v337
    %v341 = vmul.f32 %v340, 0.6931472
    %v342 = vadd.f32 %v322, %v339
    %v343 = vadd.f32 %v325, %v341
    %v344 = vsub.f32 %v311, %v342
    %v345 = vsub.f32 %v316, %v343
    %v346 = vmul.f32 %v344, 1.442695
    %v347 = vpow.pop %v346
    %v348 = vmul.f32 %v345, 1.442695
    %v349 = vpow.pop %v348
    %v350 = vmul.f32 %v347, %v344
    %v351 = vmul.f32 %v349, %v345
    %v352 = vsel %vm319, %v350, 0.0
    %353 = vadd.xlane.f32.xlu0 %v352
    %v354 = vpop.xlane.xlu0 %353
    %v355 = vsel %vm319, %v351, 0.0
    %356 = vadd.xlane.f32.xlu0 %v355
    %v357 = vpop.xlane.xlu0 %356
    %v358 = vsub.f32 0.0, %v354
    %v359 = vsub.f32 0.0, %v357
    %v360 = vsel %vm319, %v344, -inf
    %361 = vmax.xlane.f32.xlu0 %v360
    %v362 = vpop.xlane.xlu0 %361
    %v363 = vsel %vm319, %v345, -inf
    %364 = vmax.xlane.f32.xlu0 %v363
    %v365 = vpop.xlane.xlu0 %364
    %vm366 = vcmp.eq.f32.partialorder %v344, %v362
    %vm367 = vcmp.eq.f32.partialorder %v345, %v365
    %v368 = vsel %vm366, %v138, 16
    %v369 = vsel %vm367, %v138, 16
    %v370 = vsel %vm319, %v368, 2147483647
    %v371 = vand.u32 %v370, 65535
    %v372 = vshra.s32 %v370, 16
    %v373 = vcvt.s32.f32 %v371
    %v374 = vcvt.s32.f32 %v372
    %375 = vmin.xlane.f32.xlu0 %v374
    %v376 = vpop.xlane.xlu0 %375
    %vm377 = vcmp.eq.f32.partialorder %v374, %v376
    %v378 = vsel %vm377, %v373, inf
    %379 = vmin.xlane.f32.xlu0 %v378
    %v380 = vpop.xlane.xlu0 %379
    %v381 = vcvt.f32.s32 %v380
    %v382 = vcvt.f32.s32 %v376
    %v383 = vshll.u32 %v382, 16
    %v384 = vadd.s32 %v383, %v381
    %v385 = vsel %vm319, %v369, 2147483647
    %v386 = vand.u32 %v385, 65535
    %v387 = vshra.s32 %v385, 16
    %v388 = vcvt.s32.f32 %v386
    %v389 = vcvt.s32.f32 %v387
    %390 = vmin.xlane.f32.xlu0 %v389
    %v391 = vpop.xlane.xlu0 %390
    %vm392 = vcmp.eq.f32.partialorder %v389, %v391
    %v393 = vsel %vm392, %v388, inf
    %394 = vmin.xlane.f32.xlu0 %v393
    %v395 = vpop.xlane.xlu0 %394
    %v396 = vcvt.f32.s32 %v395
    %v397 = vcvt.f32.s32 %v391
    %v398 = vshll.u32 %v397, 16
    %v399 = vadd.s32 %v398, %v396
    %vm400 = vcmp.eq.s32.totalorder %v138, %v384
    %vm401 = vcmp.eq.s32.totalorder %v138, %v399
    %v402 = vsel %vm400, 1, 0
    %v403 = vsel %vm401, 1, 0
    %v404 = vcvt.s32.f32 %v402
    %v405 = vcvt.s32.f32 %v403
    %v407 = vlaneseq
    %v408 = vshrl.u32 %v407, 7
    %v409 = vsub.s32 0, %v408
    %v410 = vrot.slane %v41, %v409
    %v413 = vsel %vm319, %v404, 0
    %v416 = vsel %vm319, %v405, 0
    %418 = vmatprep.subr.mxu0 0.0
    %419 = vmatpush1.msra.mxu0 %v39
    %420 = vmatprep.subr.mxu0 0.0
    %421 = vmatpush1.msra.mxu0 %v40
    %422 = vmatprep.subr.mxu0 0.0
    %423 = vmatpush1.msra.mxu0 0.0
    %424 = vmatprep.subr.mxu0 0.0
    %425 = vmatpush1.msra.mxu0 0.0
    %426 = vmatprep.subr.mxu0 0.0
    %427 = vmatpush1.msra.mxu0 0.0
    %428 = vmatprep.subr.mxu0 0.0
    %429 = vmatpush1.msra.mxu0 0.0
    %430 = vmatprep.subr.mxu0 0.0
    %431 = vmatpush1.msra.mxu0 0.0
    %432 = vmatprep.subr.mxu0 0.0
    %433 = vmatpush1.msra.mxu0 0.0
    %434 = vmatprep.subr.mxu0 0.0
    %435 = vmatpush1.msra.mxu0 0.0
    %436 = vmatprep.subr.mxu0 0.0
    %437 = vmatpush1.msra.mxu0 0.0
    %438 = vmatprep.subr.mxu0 0.0
    %439 = vmatpush1.msra.mxu0 0.0
    %440 = vmatprep.subr.mxu0 0.0
    %441 = vmatpush1.msra.mxu0 0.0
    %442 = vmatprep.subr.mxu0 0.0
    %443 = vmatpush1.msra.mxu0 0.0
    %444 = vmatprep.subr.mxu0 0.0
    %445 = vmatpush1.msra.mxu0 0.0
    %446 = vmatprep.subr.mxu0 0.0
    %447 = vmatpush1.msra.mxu0 0.0
    %448 = vmatprep.subr.mxu0 0.0
    %449 = vmatpush1.msra.mxu0 0.0
    %450 = vmatprep.subr.mxu0 0.0
    %451 = vmatpush1.msra.mxu0 0.0
    %452 = vmatprep.subr.mxu0 0.0
    %453 = vmatpush1.msra.mxu0 0.0
    %454 = vmatprep.subr.mxu0 0.0
    %455 = vmatpush1.msra.mxu0 0.0
    %456 = vmatprep.subr.mxu0 0.0
    %457 = vmatpush1.msra.mxu0 0.0
    %458 = vmatprep.subr.mxu0 0.0
    %459 = vmatpush1.msra.mxu0 0.0
    %460 = vmatprep.subr.mxu0 0.0
    %461 = vmatpush1.msra.mxu0 0.0
    %462 = vmatprep.subr.mxu0 0.0
    %463 = vmatpush1.msra.mxu0 0.0
    %464 = vmatprep.subr.mxu0 0.0
    %465 = vmatpush1.msra.mxu0 0.0
    %466 = vmatprep.subr.mxu0 0.0
    %467 = vmatpush1.msra.mxu0 0.0
    %468 = vmatprep.subr.mxu0 0.0
    %469 = vmatpush1.msra.mxu0 0.0
    %470 = vmatprep.subr.mxu0 0.0
    %471 = vmatpush1.msra.mxu0 0.0
    %472 = vmatprep.subr.mxu0 0.0
    %473 = vmatpush1.msra.mxu0 0.0
    %474 = vmatprep.subr.mxu0 0.0
    %475 = vmatpush1.msra.mxu0 0.0
    %476 = vmatprep.subr.mxu0 0.0
    %477 = vmatpush1.msra.mxu0 0.0
    %478 = vmatprep.subr.mxu0 0.0
    %479 = vmatpush1.msra.mxu0 0.0
    %480 = vmatprep.subr.mxu0 0.0
    %481 = vmatpush1.msra.mxu0 0.0
    %482 = vmatprep.mubr.f32.mxu0 0.0
    %483 = vmatmul.mubr.f32.gmra.mrb[0].mxu0 %v413
    %v484 = vpop.f32.mrb[0].mxu0
    %v485 = vadd.f32 %v410, %v484
    %v486 = vpop.f32.mrb[0].mxu0
    %487 = vmatprep.mubr.f32.mxu0 0.0
    %488 = vmatmul.mubr.f32.gmra.mrb[0].mxu0 %v416
    %v489 = vpop.f32.mrb[0].mxu0
    %v490 = vadd.f32 %v410, %v489
    %v491 = vpop.f32.mrb[0].mxu0
    %492 = vdwg.mxu0
    %v493 = vcvt.s32.f32 %v384
    %v494 = vcvt.s32.f32 %v399
    %v495 = vsel %vm319, %v344, %v493
    %v496 = vsel %vm319, %v345, %v494
    %vm497 = vcmask 138240
    %v498 = vsel %vm497, %v495, %v362
    %v499 = vsel %vm497, %v496, %v365
    %vm500 = vcmask 146432
    %v501 = vsel %vm500, %v498, %v358
    %v502 = vsel %vm500, %v499, %v359
    %vm503 = vcmask 154624
    %v504 = vsel %vm503, %v501, 0.0
    %v505 = vsel %vm503, %v502, 0.0
    %506 = vst.msk [vmem:[#allocation2] sm:$0xff] %vm140, %v504
    %507 = vst.msk [vmem:[#allocation2 + $0x8] sm:$0xff] %vm140, %v505
    %508 = vmatprep.subr.mxu0 0.0
    %509 = vmatpush1.msra.mxu0 %v35
    %510 = vmatprep.subr.mxu0 0.0
    %511 = vmatpush1.msra.mxu0 %v36
    %512 = vmatprep.subr.mxu0 0.0
    %513 = vmatpush1.msra.mxu0 %v37
    %514 = vmatprep.subr.mxu0 0.0
    %515 = vmatpush1.msra.mxu0 %v38
    %516 = vmatprep.subr.mxu0 0.0
    %517 = vmatpush1.msra.mxu0 0.0
    %518 = vmatprep.subr.mxu0 0.0
    %519 = vmatpush1.msra.mxu0 0.0
    %520 = vmatprep.subr.mxu0 0.0
    %521 = vmatpush1.msra.mxu0 0.0
    %522 = vmatprep.subr.mxu0 0.0
    %523 = vmatpush1.msra.mxu0 0.0
    %524 = vmatprep.subr.mxu0 0.0
    %525 = vmatpush1.msra.mxu0 0.0
    %526 = vmatprep.subr.mxu0 0.0
    %527 = vmatpush1.msra.mxu0 0.0
    %528 = vmatprep.subr.mxu0 0.0
    %529 = vmatpush1.msra.mxu0 0.0
    %530 = vmatprep.subr.mxu0 0.0
    %531 = vmatpush1.msra.mxu0 0.0
    %532 = vmatprep.subr.mxu0 0.0
    %533 = vmatpush1.msra.mxu0 0.0
    %534 = vmatprep.subr.mxu0 0.0
    %535 = vmatpush1.msra.mxu0 0.0
    %536 = vmatprep.subr.mxu0 0.0
    %537 = vmatpush1.msra.mxu0 0.0
    %538 = vmatprep.subr.mxu0 0.0
    %539 = vmatpush1.msra.mxu0 0.0
    %540 = vmatprep.subr.mxu0 0.0
    %541 = vmatpush1.msra.mxu0 0.0
    %542 = vmatprep.subr.mxu0 0.0
    %543 = vmatpush1.msra.mxu0 0.0
    %544 = vmatprep.subr.mxu0 0.0
    %545 = vmatpush1.msra.mxu0 0.0
    %546 = vmatprep.subr.mxu0 0.0
    %547 = vmatpush1.msra.mxu0 0.0
    %548 = vmatprep.subr.mxu0 0.0
    %549 = vmatpush1.msra.mxu0 0.0
    %550 = vmatprep.subr.mxu0 0.0
    %551 = vmatpush1.msra.mxu0 0.0
    %552 = vmatprep.subr.mxu0 0.0
    %553 = vmatpush1.msra.mxu0 0.0
    %554 = vmatprep.subr.mxu0 0.0
    %555 = vmatpush1.msra.mxu0 0.0
    %556 = vmatprep.subr.mxu0 0.0
    %557 = vmatpush1.msra.mxu0 0.0
    %558 = vmatprep.subr.mxu0 0.0
    %559 = vmatpush1.msra.mxu0 0.0
    %560 = vmatprep.subr.mxu0 0.0
    %561 = vmatpush1.msra.mxu0 0.0
    %562 = vmatprep.subr.mxu0 0.0
    %563 = vmatpush1.msra.mxu0 0.0
    %564 = vmatprep.subr.mxu0 0.0
    %565 = vmatpush1.msra.mxu0 0.0
    %566 = vmatprep.subr.mxu0 0.0
    %567 = vmatpush1.msra.mxu0 0.0
    %568 = vmatprep.subr.mxu0 0.0
    %569 = vmatpush1.msra.mxu0 0.0
    %570 = vmatprep.subr.mxu0 0.0
    %571 = vmatpush1.msra.mxu0 0.0
    %572 = vmatprep.mubr.f32.mxu0 0.0
    %573 = vmatmul.mubr.f32.gmra.mrb[0].mxu0 %v239
    %v574 = vpop.f32.mrb[0].mxu0
    %v575 = vadd.f32 0.0, %v574
    %v576 = vpop.f32.mrb[0].mxu0
    %577 = vmatprep.mubr.f32.mxu0 0.0
    %578 = vmatmul.mubr.f32.gmra.mrb[0].mxu0 %v242
    %v579 = vpop.f32.mrb[0].mxu0
    %v580 = vadd.f32 0.0, %v579
    %v581 = vpop.f32.mrb[0].mxu0
    %582 = vdwg.mxu0
    %v583 = vadd.f32 %v485, %v575
    %v584 = vadd.f32 %v490, %v580
    %v585 = vtanh.pop %v583
    %v586 = vtanh.pop %v584
    %v588 = vsel %vm140, %v585, 0
    %v591 = vsel %vm140, %v586, 0
    %593 = vmatprep.subr.mxu0 0.0
    %594 = vmatpush1.msra.mxu0 %v42
    %595 = vmatprep.subr.mxu0 0.0
    %596 = vmatpush1.msra.mxu0 %v43
    %597 = vmatprep.subr.mxu0 0.0
    %598 = vmatpush1.msra.mxu0 %v44
    %599 = vmatprep.subr.mxu0 0.0
    %600 = vmatpush1.msra.mxu0 %v45
    %601 = vmatprep.subr.mxu0 0.0
    %602 = vmatpush1.msra.mxu0 0.0
    %603 = vmatprep.subr.mxu0 0.0
    %604 = vmatpush1.msra.mxu0 0.0
    %605 = vmatprep.subr.mxu0 0.0
    %606 = vmatpush1.msra.mxu0 0.0
    %607 = vmatprep.subr.mxu0 0.0
    %608 = vmatpush1.msra.mxu0 0.0
    %609 = vmatprep.subr.mxu0 0.0
    %610 = vmatpush1.msra.mxu0 0.0
    %611 = vmatprep.subr.mxu0 0.0
    %612 = vmatpush1.msra.mxu0 0.0
    %613 = vmatprep.subr.mxu0 0.0
    %614 = vmatpush1.msra.mxu0 0.0
    %615 = vmatprep.subr.mxu0 0.0
    %616 = vmatpush1.msra.mxu0 0.0
    %617 = vmatprep.subr.mxu0 0.0
    %618 = vmatpush1.msra.mxu0 0.0
    %619 = vmatprep.subr.mxu0 0.0
    %620 = vmatpush1.msra.mxu0 0.0
    %621 = vmatprep.subr.mxu0 0.0
    %622 = vmatpush1.msra.mxu0 0.0
    %623 = vmatprep.subr.mxu0 0.0
    %624 = vmatpush1.msra.mxu0 0.0
    %625 = vmatprep.subr.mxu0 0.0
    %626 = vmatpush1.msra.mxu0 0.0
    %627 = vmatprep.subr.mxu0 0.0
    %628 = vmatpush1.msra.mxu0 0.0
    %629 = vmatprep.subr.mxu0 0.0
    %630 = vmatpush1.msra.mxu0 0.0
    %631 = vmatprep.subr.mxu0 0.0
    %632 = vmatpush1.msra.mxu0 0.0
    %633 = vmatprep.subr.mxu0 0.0
    %634 = vmatpush1.msra.mxu0 0.0
    %635 = vmatprep.subr.mxu0 0.0
    %636 = vmatpush1.msra.mxu0 0.0
    %637 = vmatprep.subr.mxu0 0.0
    %638 = vmatpush1.msra.mxu0 0.0
    %639 = vmatprep.subr.mxu0 0.0
    %640 = vmatpush1.msra.mxu0 0.0
    %641 = vmatprep.subr.mxu0 0.0
    %642 = vmatpush1.msra.mxu0 0.0
    %643 = vmatprep.subr.mxu0 0.0
    %644 = vmatpush1.msra.mxu0 0.0
    %645 = vmatprep.subr.mxu0 0.0
    %646 = vmatpush1.msra.mxu0 0.0
    %647 = vmatprep.subr.mxu0 0.0
    %648 = vmatpush1.msra.mxu0 0.0
    %649 = vmatprep.subr.mxu0 0.0
    %650 = vmatpush1.msra.mxu0 0.0
    %651 = vmatprep.subr.mxu0 0.0
    %652 = vmatpush1.msra.mxu0 0.0
    %653 = vmatprep.subr.mxu0 0.0
    %654 = vmatpush1.msra.mxu0 0.0
    %655 = vmatprep.subr.mxu0 0.0
    %656 = vmatpush1.msra.mxu0 0.0
    %657 = vmatprep.mubr.f32.mxu0 0.0
    %658 = vmatmul.mubr.f32.gmra.mrb[0].mxu0 %v588
    %v659 = vpop.f32.mrb[0].mxu0
    %v660 = vadd.f32 %v236, %v659
    %v661 = vpop.f32.mrb[0].mxu0
    %662 = vmatprep.mubr.f32.mxu0 0.0
    %663 = vmatmul.mubr.f32.gmra.mrb[0].mxu0 %v591
    %v664 = vpop.f32.mrb[0].mxu0
    %v665 = vadd.f32 %v236, %v664
    %v666 = vpop.f32.mrb[0].mxu0
    %667 = vdwg.mxu0
    %v668 = vsel %vm319, %v660, -inf
    %669 = vmax.xlane.f32.xlu0 %v668
    %v670 = vpop.xlane.xlu0 %669
    %v671 = vsel %vm319, %v665, -inf
    %672 = vmax.xlane.f32.xlu0 %v671
    %v673 = vpop.xlane.xlu0 %672
    %v674 = vsub.f32 %v660, %v670
    %v675 = vsub.f32 %v665, %v673
    %v676 = vmul.f32 %v674, 1.442695
    %v677 = vpow.pop %v676
    %v678 = vmul.f32 %v675, 1.442695
    %v679 = vpow.pop %v678
    %v680 = vsel %vm319, %v677, 0.0
    %681 = vadd.xlane.f32.xlu0 %v680
    %v682 = vpop.xlane.xlu0 %681
    %v683 = vsel %vm319, %v679, 0.0
    %684 = vadd.xlane.f32.xlu0 %v683
    %v685 = vpop.xlane.xlu0 %684
    %v686 = vlog2.pop %v682
    %v687 = vmul.f32 %v686, 0.6931472
    %v688 = vlog2.pop %v685
    %v689 = vmul.f32 %v688, 0.6931472
    %v690 = vadd.f32 %v670, %v687
    %v691 = vadd.f32 %v673, %v689
    %v692 = vsub.f32 %v660, %v690
    %v693 = vsub.f32 %v665, %v691
    %v694 = vmul.f32 %v692, 1.442695
    %v695 = vpow.pop %v694
    %v696 = vmul.f32 %v693, 1.442695
    %v697 = vpow.pop %v696
    %v698 = vmul.f32 %v695, %v692
    %v699 = vmul.f32 %v697, %v693
    %v700 = vsel %vm319, %v698, 0.0
    %701 = vadd.xlane.f32.xlu0 %v700
    %v702 = vpop.xlane.xlu0 %701
    %v703 = vsel %vm319, %v699, 0.0
    %704 = vadd.xlane.f32.xlu0 %v703
    %v705 = vpop.xlane.xlu0 %704
    %v706 = vsub.f32 0.0, %v702
    %v707 = vsub.f32 0.0, %v705
    %v708 = vsel %vm319, %v692, -inf
    %709 = vmax.xlane.f32.xlu0 %v708
    %v710 = vpop.xlane.xlu0 %709
    %v711 = vsel %vm319, %v693, -inf
    %712 = vmax.xlane.f32.xlu0 %v711
    %v713 = vpop.xlane.xlu0 %712
    %vm714 = vcmp.eq.f32.partialorder %v692, %v710
    %vm715 = vcmp.eq.f32.partialorder %v693, %v713
    %v716 = vsel %vm714, %v138, 16
    %v717 = vsel %vm715, %v138, 16
    %v718 = vsel %vm319, %v716, 2147483647
    %v719 = vand.u32 %v718, 65535
    %v720 = vshra.s32 %v718, 16
    %v721 = vcvt.s32.f32 %v719
    %v722 = vcvt.s32.f32 %v720
    %723 = vmin.xlane.f32.xlu0 %v722
    %v724 = vpop.xlane.xlu0 %723
    %vm725 = vcmp.eq.f32.partialorder %v722, %v724
    %v726 = vsel %vm725, %v721, inf
    %727 = vmin.xlane.f32.xlu0 %v726
    %v728 = vpop.xlane.xlu0 %727
    %v729 = vcvt.f32.s32 %v728
    %v730 = vcvt.f32.s32 %v724
    %v731 = vshll.u32 %v730, 16
    %v732 = vadd.s32 %v731, %v729
    %v733 = vsel %vm319, %v717, 2147483647
    %v734 = vand.u32 %v733, 65535
    %v735 = vshra.s32 %v733, 16
    %v736 = vcvt.s32.f32 %v734
    %v737 = vcvt.s32.f32 %v735
    %738 = vmin.xlane.f32.xlu0 %v737
    %v739 = vpop.xlane.xlu0 %738
    %vm740 = vcmp.eq.f32.partialorder %v737, %v739
    %v741 = vsel %vm740, %v736, inf
    %742 = vmin.xlane.f32.xlu0 %v741
    %v743 = vpop.xlane.xlu0 %742
    %v744 = vcvt.f32.s32 %v743
    %v745 = vcvt.f32.s32 %v739
    %v746 = vshll.u32 %v745, 16
    %v747 = vadd.s32 %v746, %v744
    %vm748 = vcmp.eq.s32.totalorder %v138, %v732
    %vm749 = vcmp.eq.s32.totalorder %v138, %v747
    %v750 = vsel %vm748, 1, 0
    %v751 = vsel %vm749, 1, 0
    %v752 = vcvt.s32.f32 %v750
    %v753 = vcvt.s32.f32 %v751
    %v755 = vsel %vm319, %v752, 0
    %v758 = vsel %vm319, %v753, 0
    %760 = vmatprep.subr.mxu0 0.0
    %761 = vmatpush1.msra.mxu0 %v39
    %762 = vmatprep.subr.mxu0 0.0
    %763 = vmatpush1.msra.mxu0 %v40
    %764 = vmatprep.subr.mxu0 0.0
    %765 = vmatpush1.msra.mxu0 0.0
    %766 = vmatprep.subr.mxu0 0.0
    %767 = vmatpush1.msra.mxu0 0.0
    %768 = vmatprep.subr.mxu0 0.0
    %769 = vmatpush1.msra.mxu0 0.0
    %770 = vmatprep.subr.mxu0 0.0
    %771 = vmatpush1.msra.mxu0 0.0
    %772 = vmatprep.subr.mxu0 0.0
    %773 = vmatpush1.msra.mxu0 0.0
    %774 = vmatprep.subr.mxu0 0.0
    %775 = vmatpush1.msra.mxu0 0.0
    %776 = vmatprep.subr.mxu0 0.0
    %777 = vmatpush1.msra.mxu0 0.0
    %778 = vmatprep.subr.mxu0 0.0
    %779 = vmatpush1.msra.mxu0 0.0
    %780 = vmatprep.subr.mxu0 0.0
    %781 = vmatpush1.msra.mxu0 0.0
    %782 = vmatprep.subr.mxu0 0.0
    %783 = vmatpush1.msra.mxu0 0.0
    %784 = vmatprep.subr.mxu0 0.0
    %785 = vmatpush1.msra.mxu0 0.0
    %786 = vmatprep.subr.mxu0 0.0
    %787 = vmatpush1.msra.mxu0 0.0
    %788 = vmatprep.subr.mxu0 0.0
    %789 = vmatpush1.msra.mxu0 0.0
    %790 = vmatprep.subr.mxu0 0.0
    %791 = vmatpush1.msra.mxu0 0.0
    %792 = vmatprep.subr.mxu0 0.0
    %793 = vmatpush1.msra.mxu0 0.0
    %794 = vmatprep.subr.mxu0 0.0
    %795 = vmatpush1.msra.mxu0 0.0
    %796 = vmatprep.subr.mxu0 0.0
    %797 = vmatpush1.msra.mxu0 0.0
    %798 = vmatprep.subr.mxu0 0.0
    %799 = vmatpush1.msra.mxu0 0.0
    %800 = vmatprep.subr.mxu0 0.0
    %801 = vmatpush1.msra.mxu0 0.0
    %802 = vmatprep.subr.mxu0 0.0
    %803 = vmatpush1.msra.mxu0 0.0
    %804 = vmatprep.subr.mxu0 0.0
    %805 = vmatpush1.msra.mxu0 0.0
    %806 = vmatprep.subr.mxu0 0.0
    %807 = vmatpush1.msra.mxu0 0.0
    %808 = vmatprep.subr.mxu0 0.0
    %809 = vmatpush1.msra.mxu0 0.0
    %810 = vmatprep.subr.mxu0 0.0
    %811 = vmatpush1.msra.mxu0 0.0
    %812 = vmatprep.subr.mxu0 0.0
    %813 = vmatpush1.msra.mxu0 0.0
    %814 = vmatprep.subr.mxu0 0.0
    %815 = vmatpush1.msra.mxu0 0.0
    %816 = vmatprep.subr.mxu0 0.0
    %817 = vmatpush1.msra.mxu0 0.0
    %818 = vmatprep.subr.mxu0 0.0
    %819 = vmatpush1.msra.mxu0 0.0
    %820 = vmatprep.subr.mxu0 0.0
    %821 = vmatpush1.msra.mxu0 0.0
    %822 = vmatprep.subr.mxu0 0.0
    %823 = vmatpush1.msra.mxu0 0.0
    %824 = vmatprep.mubr.f32.mxu0 0.0
    %825 = vmatmul.mubr.f32.gmra.mrb[0].mxu0 %v755
    %v826 = vpop.f32.mrb[0].mxu0
    %v827 = vadd.f32 %v410, %v826
    %v828 = vpop.f32.mrb[0].mxu0
    %829 = vmatprep.mubr.f32.mxu0 0.0
    %830 = vmatmul.mubr.f32.gmra.mrb[0].mxu0 %v758
    %v831 = vpop.f32.mrb[0].mxu0
    %v832 = vadd.f32 %v410, %v831
    %v833 = vpop.f32.mrb[0].mxu0
    %834 = vdwg.mxu0
    %v835 = vcvt.s32.f32 %v732
    %v836 = vcvt.s32.f32 %v747
    %v837 = vsel %vm319, %v692, %v835
    %v838 = vsel %vm319, %v693, %v836
    %v839 = vsel %vm497, %v837, %v710
    %v840 = vsel %vm497, %v838, %v713
    %v841 = vsel %vm500, %v839, %v706
    %v842 = vsel %vm500, %v840, %v707
    %v843 = vsel %vm503, %v841, 0.0
    %v844 = vsel %vm503, %v842, 0.0
    %s845 = scalar_lea.vmem [#allocation2], 16
    %846 = vst.msk [vmem:[%s845] sm:$0xff] %vm140, %v843
    %847 = vst.msk [vmem:[%s845 + $0x8] sm:$0xff] %vm140, %v844
    %848 = vmatprep.subr.mxu0 0.0
    %849 = vmatpush1.msra.mxu0 %v35
    %850 = vmatprep.subr.mxu0 0.0
    %851 = vmatpush1.msra.mxu0 %v36
    %852 = vmatprep.subr.mxu0 0.0
    %853 = vmatpush1.msra.mxu0 %v37
    %854 = vmatprep.subr.mxu0 0.0
    %855 = vmatpush1.msra.mxu0 %v38
    %856 = vmatprep.subr.mxu0 0.0
    %857 = vmatpush1.msra.mxu0 0.0
    %858 = vmatprep.subr.mxu0 0.0
    %859 = vmatpush1.msra.mxu0 0.0
    %860 = vmatprep.subr.mxu0 0.0
    %861 = vmatpush1.msra.mxu0 0.0
    %862 = vmatprep.subr.mxu0 0.0
    %863 = vmatpush1.msra.mxu0 0.0
    %864 = vmatprep.subr.mxu0 0.0
    %865 = vmatpush1.msra.mxu0 0.0
    %866 = vmatprep.subr.mxu0 0.0
    %867 = vmatpush1.msra.mxu0 0.0
    %868 = vmatprep.subr.mxu0 0.0
    %869 = vmatpush1.msra.mxu0 0.0
    %870 = vmatprep.subr.mxu0 0.0
    %871 = vmatpush1.msra.mxu0 0.0
    %872 = vmatprep.subr.mxu0 0.0
    %873 = vmatpush1.msra.mxu0 0.0
    %874 = vmatprep.subr.mxu0 0.0
    %875 = vmatpush1.msra.mxu0 0.0
    %876 = vmatprep.subr.mxu0 0.0
    %877 = vmatpush1.msra.mxu0 0.0
    %878 = vmatprep.subr.mxu0 0.0
    %879 = vmatpush1.msra.mxu0 0.0
    %880 = vmatprep.subr.mxu0 0.0
    %881 = vmatpush1.msra.mxu0 0.0
    %882 = vmatprep.subr.mxu0 0.0
    %883 = vmatpush1.msra.mxu0 0.0
    %884 = vmatprep.subr.mxu0 0.0
    %885 = vmatpush1.msra.mxu0 0.0
    %886 = vmatprep.subr.mxu0 0.0
    %887 = vmatpush1.msra.mxu0 0.0
    %888 = vmatprep.subr.mxu0 0.0
    %889 = vmatpush1.msra.mxu0 0.0
    %890 = vmatprep.subr.mxu0 0.0
    %891 = vmatpush1.msra.mxu0 0.0
    %892 = vmatprep.subr.mxu0 0.0
    %893 = vmatpush1.msra.mxu0 0.0
    %894 = vmatprep.subr.mxu0 0.0
    %895 = vmatpush1.msra.mxu0 0.0
    %896 = vmatprep.subr.mxu0 0.0
    %897 = vmatpush1.msra.mxu0 0.0
    %898 = vmatprep.subr.mxu0 0.0
    %899 = vmatpush1.msra.mxu0 0.0
    %900 = vmatprep.subr.mxu0 0.0
    %901 = vmatpush1.msra.mxu0 0.0
    %902 = vmatprep.subr.mxu0 0.0
    %903 = vmatpush1.msra.mxu0 0.0
    %904 = vmatprep.subr.mxu0 0.0
    %905 = vmatpush1.msra.mxu0 0.0
    %906 = vmatprep.subr.mxu0 0.0
    %907 = vmatpush1.msra.mxu0 0.0
    %908 = vmatprep.subr.mxu0 0.0
    %909 = vmatpush1.msra.mxu0 0.0
    %910 = vmatprep.subr.mxu0 0.0
    %911 = vmatpush1.msra.mxu0 0.0
    %912 = vmatprep.mubr.f32.mxu0 0.0
    %913 = vmatmul.mubr.f32.gmra.mrb[0].mxu0 %v588
    %v914 = vpop.f32.mrb[0].mxu0
    %v915 = vadd.f32 0.0, %v914
    %v916 = vpop.f32.mrb[0].mxu0
    %917 = vmatprep.mubr.f32.mxu0 0.0
    %918 = vmatmul.mubr.f32.gmra.mrb[0].mxu0 %v591
    %v919 = vpop.f32.mrb[0].mxu0
    %v920 = vadd.f32 0.0, %v919
    %v921 = vpop.f32.mrb[0].mxu0
    %922 = vdwg.mxu0
    %v923 = vadd.f32 %v827, %v915
    %v924 = vadd.f32 %v832, %v920
    %v925 = vtanh.pop %v923
    %v926 = vtanh.pop %v924
    %v928 = vsel %vm140, %v925, 0
    %v931 = vsel %vm140, %v926, 0
    %933 = vmatprep.subr.mxu0 0.0
    %934 = vmatpush1.msra.mxu0 %v42
    %935 = vmatprep.subr.mxu0 0.0
    %936 = vmatpush1.msra.mxu0 %v43
    %937 = vmatprep.subr.mxu0 0.0
    %938 = vmatpush1.msra.mxu0 %v44
    %939 = vmatprep.subr.mxu0 0.0
    %940 = vmatpush1.msra.mxu0 %v45
    %941 = vmatprep.subr.mxu0 0.0
    %942 = vmatpush1.msra.mxu0 0.0
    %943 = vmatprep.subr.mxu0 0.0
    %944 = vmatpush1.msra.mxu0 0.0
    %945 = vmatprep.subr.mxu0 0.0
    %946 = vmatpush1.msra.mxu0 0.0
    %947 = vmatprep.subr.mxu0 0.0
    %948 = vmatpush1.msra.mxu0 0.0
    %949 = vmatprep.subr.mxu0 0.0
    %950 = vmatpush1.msra.mxu0 0.0
    %951 = vmatprep.subr.mxu0 0.0
    %952 = vmatpush1.msra.mxu0 0.0
    %953 = vmatprep.subr.mxu0 0.0
    %954 = vmatpush1.msra.mxu0 0.0
    %955 = vmatprep.subr.mxu0 0.0
    %956 = vmatpush1.msra.mxu0 0.0
    %957 = vmatprep.subr.mxu0 0.0
    %958 = vmatpush1.msra.mxu0 0.0
    %959 = vmatprep.subr.mxu0 0.0
    %960 = vmatpush1.msra.mxu0 0.0
    %961 = vmatprep.subr.mxu0 0.0
    %962 = vmatpush1.msra.mxu0 0.0
    %963 = vmatprep.subr.mxu0 0.0
    %964 = vmatpush1.msra.mxu0 0.0
    %965 = vmatprep.subr.mxu0 0.0
    %966 = vmatpush1.msra.mxu0 0.0
    %967 = vmatprep.subr.mxu0 0.0
    %968 = vmatpush1.msra.mxu0 0.0
    %969 = vmatprep.subr.mxu0 0.0
    %970 = vmatpush1.msra.mxu0 0.0
    %971 = vmatprep.subr.mxu0 0.0
    %972 = vmatpush1.msra.mxu0 0.0
    %973 = vmatprep.subr.mxu0 0.0
    %974 = vmatpush1.msra.mxu0 0.0
    %975 = vmatprep.subr.mxu0 0.0
    %976 = vmatpush1.msra.mxu0 0.0
    %977 = vmatprep.subr.mxu0 0.0
    %978 = vmatpush1.msra.mxu0 0.0
    %979 = vmatprep.subr.mxu0 0.0
    %980 = vmatpush1.msra.mxu0 0.0
    %981 = vmatprep.subr.mxu0 0.0
    %982 = vmatpush1.msra.mxu0 0.0
    %983 = vmatprep.subr.mxu0 0.0
    %984 = vmatpush1.msra.mxu0 0.0
    %985 = vmatprep.subr.mxu0 0.0
    %986 = vmatpush1.msra.mxu0 0.0
    %987 = vmatprep.subr.mxu0 0.0
    %988 = vmatpush1.msra.mxu0 0.0
    %989 = vmatprep.subr.mxu0 0.0
    %990 = vmatpush1.msra.mxu0 0.0
    %991 = vmatprep.subr.mxu0 0.0
    %992 = vmatpush1.msra.mxu0 0.0
    %993 = vmatprep.subr.mxu0 0.0
    %994 = vmatpush1.msra.mxu0 0.0
    %995 = vmatprep.subr.mxu0 0.0
    %996 = vmatpush1.msra.mxu0 0.0
    %997 = vmatprep.mubr.f32.mxu0 0.0
    %998 = vmatmul.mubr.f32.gmra.mrb[0].mxu0 %v928
    %v999 = vpop.f32.mrb[0].mxu0
    %v1000 = vadd.f32 %v236, %v999
    %v1001 = vpop.f32.mrb[0].mxu0
    %1002 = vmatprep.mubr.f32.mxu0 0.0
    %1003 = vmatmul.mubr.f32.gmra.mrb[0].mxu0 %v931
    %v1004 = vpop.f32.mrb[0].mxu0
    %v1005 = vadd.f32 %v236, %v1004
    %v1006 = vpop.f32.mrb[0].mxu0
    %1007 = vdwg.mxu0
    %v1008 = vsel %vm319, %v1000, -inf
    %1009 = vmax.xlane.f32.xlu0 %v1008
    %v1010 = vpop.xlane.xlu0 %1009
    %v1011 = vsel %vm319, %v1005, -inf
    %1012 = vmax.xlane.f32.xlu0 %v1011
    %v1013 = vpop.xlane.xlu0 %1012
    %v1014 = vsub.f32 %v1000, %v1010
    %v1015 = vsub.f32 %v1005, %v1013
    %v1016 = vmul.f32 %v1014, 1.442695
    %v1017 = vpow.pop %v1016
    %v1018 = vmul.f32 %v1015, 1.442695
    %v1019 = vpow.pop %v1018
    %v1020 = vsel %vm319, %v1017, 0.0
    %1021 = vadd.xlane.f32.xlu0 %v1020
    %v1022 = vpop.xlane.xlu0 %1021
    %v1023 = vsel %vm319, %v1019, 0.0
    %1024 = vadd.xlane.f32.xlu0 %v1023
    %v1025 = vpop.xlane.xlu0 %1024
    %v1026 = vlog2.pop %v1022
    %v1027 = vmul.f32 %v1026, 0.6931472
    %v1028 = vlog2.pop %v1025
    %v1029 = vmul.f32 %v1028, 0.6931472
    %v1030 = vadd.f32 %v1010, %v1027
    %v1031 = vadd.f32 %v1013, %v1029
    %v1032 = vsub.f32 %v1000, %v1030
    %v1033 = vsub.f32 %v1005, %v1031
    %v1034 = vmul.f32 %v1032, 1.442695
    %v1035 = vpow.pop %v1034
    %v1036 = vmul.f32 %v1033, 1.442695
    %v1037 = vpow.pop %v1036
    %v1038 = vmul.f32 %v1035, %v1032
    %v1039 = vmul.f32 %v1037, %v1033
    %v1040 = vsel %vm319, %v1038, 0.0
    %1041 = vadd.xlane.f32.xlu0 %v1040
    %v1042 = vpop.xlane.xlu0 %1041
    %v1043 = vsel %vm319, %v1039, 0.0
    %1044 = vadd.xlane.f32.xlu0 %v1043
    %v1045 = vpop.xlane.xlu0 %1044
    %v1046 = vsub.f32 0.0, %v1042
    %v1047 = vsub.f32 0.0, %v1045
    %v1048 = vsel %vm319, %v1032, -inf
    %1049 = vmax.xlane.f32.xlu0 %v1048
    %v1050 = vpop.xlane.xlu0 %1049
    %v1051 = vsel %vm319, %v1033, -inf
    %1052 = vmax.xlane.f32.xlu0 %v1051
    %v1053 = vpop.xlane.xlu0 %1052
    %vm1054 = vcmp.eq.f32.partialorder %v1032, %v1050
    %vm1055 = vcmp.eq.f32.partialorder %v1033, %v1053
    %v1056 = vsel %vm1054, %v138, 16
    %v1057 = vsel %vm1055, %v138, 16
    %v1058 = vsel %vm319, %v1056, 2147483647
    %v1059 = vand.u32 %v1058, 65535
    %v1060 = vshra.s32 %v1058, 16
    %v1061 = vcvt.s32.f32 %v1059
    %v1062 = vcvt.s32.f32 %v1060
    %1063 = vmin.xlane.f32.xlu0 %v1062
    %v1064 = vpop.xlane.xlu0 %1063
    %vm1065 = vcmp.eq.f32.partialorder %v1062, %v1064
    %v1066 = vsel %vm1065, %v1061, inf
    %1067 = vmin.xlane.f32.xlu0 %v1066
    %v1068 = vpop.xlane.xlu0 %1067
    %v1069 = vcvt.f32.s32 %v1068
    %v1070 = vcvt.f32.s32 %v1064
    %v1071 = vshll.u32 %v1070, 16
    %v1072 = vadd.s32 %v1071, %v1069
    %v1073 = vsel %vm319, %v1057, 2147483647
    %v1074 = vand.u32 %v1073, 65535
    %v1075 = vshra.s32 %v1073, 16
    %v1076 = vcvt.s32.f32 %v1074
    %v1077 = vcvt.s32.f32 %v1075
    %1078 = vmin.xlane.f32.xlu0 %v1077
    %v1079 = vpop.xlane.xlu0 %1078
    %vm1080 = vcmp.eq.f32.partialorder %v1077, %v1079
    %v1081 = vsel %vm1080, %v1076, inf
    %1082 = vmin.xlane.f32.xlu0 %v1081
    %v1083 = vpop.xlane.xlu0 %1082
    %v1084 = vcvt.f32.s32 %v1083
    %v1085 = vcvt.f32.s32 %v1079
    %v1086 = vshll.u32 %v1085, 16
    %v1087 = vadd.s32 %v1086, %v1084
    %vm1088 = vcmp.eq.s32.totalorder %v138, %v1072
    %vm1089 = vcmp.eq.s32.totalorder %v138, %v1087
    %v1090 = vsel %vm1088, 1, 0
    %v1091 = vsel %vm1089, 1, 0
    %v1092 = vcvt.s32.f32 %v1090
    %v1093 = vcvt.s32.f32 %v1091
    %v1095 = vsel %vm319, %v1092, 0
    %v1098 = vsel %vm319, %v1093, 0
    %1100 = vmatprep.subr.mxu0 0.0
    %1101 = vmatpush1.msra.mxu0 %v39
    %1102 = vmatprep.subr.mxu0 0.0
    %1103 = vmatpush1.msra.mxu0 %v40
    %1104 = vmatprep.subr.mxu0 0.0
    %1105 = vmatpush1.msra.mxu0 0.0
    %1106 = vmatprep.subr.mxu0 0.0
    %1107 = vmatpush1.msra.mxu0 0.0
    %1108 = vmatprep.subr.mxu0 0.0
    %1109 = vmatpush1.msra.mxu0 0.0
    %1110 = vmatprep.subr.mxu0 0.0
    %1111 = vmatpush1.msra.mxu0 0.0
    %1112 = vmatprep.subr.mxu0 0.0
    %1113 = vmatpush1.msra.mxu0 0.0
    %1114 = vmatprep.subr.mxu0 0.0
    %1115 = vmatpush1.msra.mxu0 0.0
    %1116 = vmatprep.subr.mxu0 0.0
    %1117 = vmatpush1.msra.mxu0 0.0
    %1118 = vmatprep.subr.mxu0 0.0
    %1119 = vmatpush1.msra.mxu0 0.0
    %1120 = vmatprep.subr.mxu0 0.0
    %1121 = vmatpush1.msra.mxu0 0.0
    %1122 = vmatprep.subr.mxu0 0.0
    %1123 = vmatpush1.msra.mxu0 0.0
    %1124 = vmatprep.subr.mxu0 0.0
    %1125 = vmatpush1.msra.mxu0 0.0
    %1126 = vmatprep.subr.mxu0 0.0
    %1127 = vmatpush1.msra.mxu0 0.0
    %1128 = vmatprep.subr.mxu0 0.0
    %1129 = vmatpush1.msra.mxu0 0.0
    %1130 = vmatprep.subr.mxu0 0.0
    %1131 = vmatpush1.msra.mxu0 0.0
    %1132 = vmatprep.subr.mxu0 0.0
    %1133 = vmatpush1.msra.mxu0 0.0
    %1134 = vmatprep.subr.mxu0 0.0
    %1135 = vmatpush1.msra.mxu0 0.0
    %1136 = vmatprep.subr.mxu0 0.0
    %1137 = vmatpush1.msra.mxu0 0.0
    %1138 = vmatprep.subr.mxu0 0.0
    %1139 = vmatpush1.msra.mxu0 0.0
    %1140 = vmatprep.subr.mxu0 0.0
    %1141 = vmatpush1.msra.mxu0 0.0
    %1142 = vmatprep.subr.mxu0 0.0
    %1143 = vmatpush1.msra.mxu0 0.0
    %1144 = vmatprep.subr.mxu0 0.0
    %1145 = vmatpush1.msra.mxu0 0.0
    %1146 = vmatprep.subr.mxu0 0.0
    %1147 = vmatpush1.msra.mxu0 0.0
    %1148 = vmatprep.subr.mxu0 0.0
    %1149 = vmatpush1.msra.mxu0 0.0
    %1150 = vmatprep.subr.mxu0 0.0
    %1151 = vmatpush1.msra.mxu0 0.0
    %1152 = vmatprep.subr.mxu0 0.0
    %1153 = vmatpush1.msra.mxu0 0.0
    %1154 = vmatprep.subr.mxu0 0.0
    %1155 = vmatpush1.msra.mxu0 0.0
    %1156 = vmatprep.subr.mxu0 0.0
    %1157 = vmatpush1.msra.mxu0 0.0
    %1158 = vmatprep.subr.mxu0 0.0
    %1159 = vmatpush1.msra.mxu0 0.0
    %1160 = vmatprep.subr.mxu0 0.0
    %1161 = vmatpush1.msra.mxu0 0.0
    %1162 = vmatprep.subr.mxu0 0.0
    %1163 = vmatpush1.msra.mxu0 0.0
    %1164 = vmatprep.mubr.f32.mxu0 0.0
    %1165 = vmatmul.mubr.f32.gmra.mrb[0].mxu0 %v1095
    %v1166 = vpop.f32.mrb[0].mxu0
    %v1167 = vadd.f32 %v410, %v1166
    %v1168 = vpop.f32.mrb[0].mxu0
    %1169 = vmatprep.mubr.f32.mxu0 0.0
    %1170 = vmatmul.mubr.f32.gmra.mrb[0].mxu0 %v1098
    %v1171 = vpop.f32.mrb[0].mxu0
    %v1172 = vadd.f32 %v410, %v1171
    %v1173 = vpop.f32.mrb[0].mxu0
    %1174 = vdwg.mxu0
    %v1175 = vcvt.s32.f32 %v1072
    %v1176 = vcvt.s32.f32 %v1087
    %v1177 = vsel %vm319, %v1032, %v1175
    %v1178 = vsel %vm319, %v1033, %v1176
    %v1179 = vsel %vm497, %v1177, %v1050
    %v1180 = vsel %vm497, %v1178, %v1053
    %v1181 = vsel %vm500, %v1179, %v1046
    %v1182 = vsel %vm500, %v1180, %v1047
    %v1183 = vsel %vm503, %v1181, 0.0
    %v1184 = vsel %vm503, %v1182, 0.0
    %s1185 = scalar_lea.vmem [#allocation2], 32
    %1186 = vst.msk [vmem:[%s1185] sm:$0xff] %vm140, %v1183
    %1187 = vst.msk [vmem:[%s1185 + $0x8] sm:$0xff] %vm140, %v1184
    %1188 = vmatprep.subr.mxu0 0.0
    %1189 = vmatpush1.msra.mxu0 %v35
    %1190 = vmatprep.subr.mxu0 0.0
    %1191 = vmatpush1.msra.mxu0 %v36
    %1192 = vmatprep.subr.mxu0 0.0
    %1193 = vmatpush1.msra.mxu0 %v37
    %1194 = vmatprep.subr.mxu0 0.0
    %1195 = vmatpush1.msra.mxu0 %v38
    %1196 = vmatprep.subr.mxu0 0.0
    %1197 = vmatpush1.msra.mxu0 0.0
    %1198 = vmatprep.subr.mxu0 0.0
    %1199 = vmatpush1.msra.mxu0 0.0
    %1200 = vmatprep.subr.mxu0 0.0
    %1201 = vmatpush1.msra.mxu0 0.0
    %1202 = vmatprep.subr.mxu0 0.0
    %1203 = vmatpush1.msra.mxu0 0.0
    %1204 = vmatprep.subr.mxu0 0.0
    %1205 = vmatpush1.msra.mxu0 0.0
    %1206 = vmatprep.subr.mxu0 0.0
    %1207 = vmatpush1.msra.mxu0 0.0
    %1208 = vmatprep.subr.mxu0 0.0
    %1209 = vmatpush1.msra.mxu0 0.0
    %1210 = vmatprep.subr.mxu0 0.0
    %1211 = vmatpush1.msra.mxu0 0.0
    %1212 = vmatprep.subr.mxu0 0.0
    %1213 = vmatpush1.msra.mxu0 0.0
    %1214 = vmatprep.subr.mxu0 0.0
    %1215 = vmatpush1.msra.mxu0 0.0
    %1216 = vmatprep.subr.mxu0 0.0
    %1217 = vmatpush1.msra.mxu0 0.0
    %1218 = vmatprep.subr.mxu0 0.0
    %1219 = vmatpush1.msra.mxu0 0.0
    %1220 = vmatprep.subr.mxu0 0.0
    %1221 = vmatpush1.msra.mxu0 0.0
    %1222 = vmatprep.subr.mxu0 0.0
    %1223 = vmatpush1.msra.mxu0 0.0
    %1224 = vmatprep.subr.mxu0 0.0
    %1225 = vmatpush1.msra.mxu0 0.0
    %1226 = vmatprep.subr.mxu0 0.0
    %1227 = vmatpush1.msra.mxu0 0.0
    %1228 = vmatprep.subr.mxu0 0.0
    %1229 = vmatpush1.msra.mxu0 0.0
    %1230 = vmatprep.subr.mxu0 0.0
    %1231 = vmatpush1.msra.mxu0 0.0
    %1232 = vmatprep.subr.mxu0 0.0
    %1233 = vmatpush1.msra.mxu0 0.0
    %1234 = vmatprep.subr.mxu0 0.0
    %1235 = vmatpush1.msra.mxu0 0.0
    %1236 = vmatprep.subr.mxu0 0.0
    %1237 = vmatpush1.msra.mxu0 0.0
    %1238 = vmatprep.subr.mxu0 0.0
    %1239 = vmatpush1.msra.mxu0 0.0
    %1240 = vmatprep.subr.mxu0 0.0
    %1241 = vmatpush1.msra.mxu0 0.0
    %1242 = vmatprep.subr.mxu0 0.0
    %1243 = vmatpush1.msra.mxu0 0.0
    %1244 = vmatprep.subr.mxu0 0.0
    %1245 = vmatpush1.msra.mxu0 0.0
    %1246 = vmatprep.subr.mxu0 0.0
    %1247 = vmatpush1.msra.mxu0 0.0
    %1248 = vmatprep.subr.mxu0 0.0
    %1249 = vmatpush1.msra.mxu0 0.0
    %1250 = vmatprep.subr.mxu0 0.0
    %1251 = vmatpush1.msra.mxu0 0.0
    %1252 = vmatprep.mubr.f32.mxu0 0.0
    %1253 = vmatmul.mubr.f32.gmra.mrb[0].mxu0 %v928
    %v1254 = vpop.f32.mrb[0].mxu0
    %v1255 = vadd.f32 0.0, %v1254
    %v1256 = vpop.f32.mrb[0].mxu0
    %1257 = vmatprep.mubr.f32.mxu0 0.0
    %1258 = vmatmul.mubr.f32.gmra.mrb[0].mxu0 %v931
    %v1259 = vpop.f32.mrb[0].mxu0
    %v1260 = vadd.f32 0.0, %v1259
    %v1261 = vpop.f32.mrb[0].mxu0
    %1262 = vdwg.mxu0
    %v1263 = vadd.f32 %v1167, %v1255
    %v1264 = vadd.f32 %v1172, %v1260
    %v1265 = vtanh.pop %v1263
    %v1266 = vtanh.pop %v1264
    %v1268 = vsel %vm140, %v1265, 0
    %v1271 = vsel %vm140, %v1266, 0
    %1273 = vmatprep.subr.mxu0 0.0
    %1274 = vmatpush1.msra.mxu0 %v42
    %1275 = vmatprep.subr.mxu0 0.0
    %1276 = vmatpush1.msra.mxu0 %v43
    %1277 = vmatprep.subr.mxu0 0.0
    %1278 = vmatpush1.msra.mxu0 %v44
    %1279 = vmatprep.subr.mxu0 0.0
    %1280 = vmatpush1.msra.mxu0 %v45
    %1281 = vmatprep.subr.mxu0 0.0
    %1282 = vmatpush1.msra.mxu0 0.0
    %1283 = vmatprep.subr.mxu0 0.0
    %1284 = vmatpush1.msra.mxu0 0.0
    %1285 = vmatprep.subr.mxu0 0.0
    %1286 = vmatpush1.msra.mxu0 0.0
    %1287 = vmatprep.subr.mxu0 0.0
    %1288 = vmatpush1.msra.mxu0 0.0
    %1289 = vmatprep.subr.mxu0 0.0
    %1290 = vmatpush1.msra.mxu0 0.0
    %1291 = vmatprep.subr.mxu0 0.0
    %1292 = vmatpush1.msra.mxu0 0.0
    %1293 = vmatprep.subr.mxu0 0.0
    %1294 = vmatpush1.msra.mxu0 0.0
    %1295 = vmatprep.subr.mxu0 0.0
    %1296 = vmatpush1.msra.mxu0 0.0
    %1297 = vmatprep.subr.mxu0 0.0
    %1298 = vmatpush1.msra.mxu0 0.0
    %1299 = vmatprep.subr.mxu0 0.0
    %1300 = vmatpush1.msra.mxu0 0.0
    %1301 = vmatprep.subr.mxu0 0.0
    %1302 = vmatpush1.msra.mxu0 0.0
    %1303 = vmatprep.subr.mxu0 0.0
    %1304 = vmatpush1.msra.mxu0 0.0
    %1305 = vmatprep.subr.mxu0 0.0
    %1306 = vmatpush1.msra.mxu0 0.0
    %1307 = vmatprep.subr.mxu0 0.0
    %1308 = vmatpush1.msra.mxu0 0.0
    %1309 = vmatprep.subr.mxu0 0.0
    %1310 = vmatpush1.msra.mxu0 0.0
    %1311 = vmatprep.subr.mxu0 0.0
    %1312 = vmatpush1.msra.mxu0 0.0
    %1313 = vmatprep.subr.mxu0 0.0
    %1314 = vmatpush1.msra.mxu0 0.0
    %1315 = vmatprep.subr.mxu0 0.0
    %1316 = vmatpush1.msra.mxu0 0.0
    %1317 = vmatprep.subr.mxu0 0.0
    %1318 = vmatpush1.msra.mxu0 0.0
    %1319 = vmatprep.subr.mxu0 0.0
    %1320 = vmatpush1.msra.mxu0 0.0
    %1321 = vmatprep.subr.mxu0 0.0
    %1322 = vmatpush1.msra.mxu0 0.0
    %1323 = vmatprep.subr.mxu0 0.0
    %1324 = vmatpush1.msra.mxu0 0.0
    %1325 = vmatprep.subr.mxu0 0.0
    %1326 = vmatpush1.msra.mxu0 0.0
    %1327 = vmatprep.subr.mxu0 0.0
    %1328 = vmatpush1.msra.mxu0 0.0
    %1329 = vmatprep.subr.mxu0 0.0
    %1330 = vmatpush1.msra.mxu0 0.0
    %1331 = vmatprep.subr.mxu0 0.0
    %1332 = vmatpush1.msra.mxu0 0.0
    %1333 = vmatprep.subr.mxu0 0.0
    %1334 = vmatpush1.msra.mxu0 0.0
    %1335 = vmatprep.subr.mxu0 0.0
    %1336 = vmatpush1.msra.mxu0 0.0
    %1337 = vmatprep.mubr.f32.mxu0 0.0
    %1338 = vmatmul.mubr.f32.gmra.mrb[0].mxu0 %v1268
    %v1339 = vpop.f32.mrb[0].mxu0
    %v1340 = vadd.f32 %v236, %v1339
    %v1341 = vpop.f32.mrb[0].mxu0
    %1342 = vmatprep.mubr.f32.mxu0 0.0
    %1343 = vmatmul.mubr.f32.gmra.mrb[0].mxu0 %v1271
    %v1344 = vpop.f32.mrb[0].mxu0
    %v1345 = vadd.f32 %v236, %v1344
    %v1346 = vpop.f32.mrb[0].mxu0
    %1347 = vdwg.mxu0
    %v1348 = vsel %vm319, %v1340, -inf
    %1349 = vmax.xlane.f32.xlu0 %v1348
    %v1350 = vpop.xlane.xlu0 %1349
    %v1351 = vsel %vm319, %v1345, -inf
    %1352 = vmax.xlane.f32.xlu0 %v1351
    %v1353 = vpop.xlane.xlu0 %1352
    %v1354 = vsub.f32 %v1340, %v1350
    %v1355 = vsub.f32 %v1345, %v1353
    %v1356 = vmul.f32 %v1354, 1.442695
    %v1357 = vpow.pop %v1356
    %v1358 = vmul.f32 %v1355, 1.442695
    %v1359 = vpow.pop %v1358
    %v1360 = vsel %vm319, %v1357, 0.0
    %1361 = vadd.xlane.f32.xlu0 %v1360
    %v1362 = vpop.xlane.xlu0 %1361
    %v1363 = vsel %vm319, %v1359, 0.0
    %1364 = vadd.xlane.f32.xlu0 %v1363
    %v1365 = vpop.xlane.xlu0 %1364
    %v1366 = vlog2.pop %v1362
    %v1367 = vmul.f32 %v1366, 0.6931472
    %v1368 = vlog2.pop %v1365
    %v1369 = vmul.f32 %v1368, 0.6931472
    %v1370 = vadd.f32 %v1350, %v1367
    %v1371 = vadd.f32 %v1353, %v1369
    %v1372 = vsub.f32 %v1340, %v1370
    %v1373 = vsub.f32 %v1345, %v1371
    %v1374 = vmul.f32 %v1372, 1.442695
    %v1375 = vpow.pop %v1374
    %v1376 = vmul.f32 %v1373, 1.442695
    %v1377 = vpow.pop %v1376
    %v1378 = vmul.f32 %v1375, %v1372
    %v1379 = vmul.f32 %v1377, %v1373
    %v1380 = vsel %vm319, %v1378, 0.0
    %1381 = vadd.xlane.f32.xlu0 %v1380
    %v1382 = vpop.xlane.xlu0 %1381
    %v1383 = vsel %vm319, %v1379, 0.0
    %1384 = vadd.xlane.f32.xlu0 %v1383
    %v1385 = vpop.xlane.xlu0 %1384
    %v1386 = vsub.f32 0.0, %v1382
    %v1387 = vsub.f32 0.0, %v1385
    %v1388 = vsel %vm319, %v1372, -inf
    %1389 = vmax.xlane.f32.xlu0 %v1388
    %v1390 = vpop.xlane.xlu0 %1389
    %v1391 = vsel %vm319, %v1373, -inf
    %1392 = vmax.xlane.f32.xlu0 %v1391
    %v1393 = vpop.xlane.xlu0 %1392
    %vm1394 = vcmp.eq.f32.partialorder %v1372, %v1390
    %vm1395 = vcmp.eq.f32.partialorder %v1373, %v1393
    %v1396 = vsel %vm1394, %v138, 16
    %v1397 = vsel %vm1395, %v138, 16
    %v1398 = vsel %vm319, %v1396, 2147483647
    %v1399 = vand.u32 %v1398, 65535
    %v1400 = vshra.s32 %v1398, 16
    %v1401 = vcvt.s32.f32 %v1399
    %v1402 = vcvt.s32.f32 %v1400
    %1403 = vmin.xlane.f32.xlu0 %v1402
    %v1404 = vpop.xlane.xlu0 %1403
    %vm1405 = vcmp.eq.f32.partialorder %v1402, %v1404
    %v1406 = vsel %vm1405, %v1401, inf
    %1407 = vmin.xlane.f32.xlu0 %v1406
    %v1408 = vpop.xlane.xlu0 %1407
    %v1409 = vcvt.f32.s32 %v1408
    %v1410 = vcvt.f32.s32 %v1404
    %v1411 = vshll.u32 %v1410, 16
    %v1412 = vadd.s32 %v1411, %v1409
    %v1413 = vsel %vm319, %v1397, 2147483647
    %v1414 = vand.u32 %v1413, 65535
    %v1415 = vshra.s32 %v1413, 16
    %v1416 = vcvt.s32.f32 %v1414
    %v1417 = vcvt.s32.f32 %v1415
    %1418 = vmin.xlane.f32.xlu0 %v1417
    %v1419 = vpop.xlane.xlu0 %1418
    %vm1420 = vcmp.eq.f32.partialorder %v1417, %v1419
    %v1421 = vsel %vm1420, %v1416, inf
    %1422 = vmin.xlane.f32.xlu0 %v1421
    %v1423 = vpop.xlane.xlu0 %1422
    %v1424 = vcvt.f32.s32 %v1423
    %v1425 = vcvt.f32.s32 %v1419
    %v1426 = vshll.u32 %v1425, 16
    %v1427 = vadd.s32 %v1426, %v1424
    %v1428 = vcvt.s32.f32 %v1412
    %v1429 = vcvt.s32.f32 %v1427
    %v1430 = vsel %vm319, %v1372, %v1428
    %v1431 = vsel %vm319, %v1373, %v1429
    %v1432 = vsel %vm497, %v1430, %v1390
    %v1433 = vsel %vm497, %v1431, %v1393
    %v1434 = vsel %vm500, %v1432, %v1386
    %v1435 = vsel %vm500, %v1433, %v1387
    %v1436 = vsel %vm503, %v1434, 0.0
    %v1437 = vsel %vm503, %v1435, 0.0
    %s1438 = scalar_lea.vmem [#allocation2], 48
    %1439 = vst.msk [vmem:[%s1438] sm:$0xff] %vm140, %v1436
    %1440 = vst.msk [vmem:[%s1438 + $0x8] sm:$0xff] %vm140, %v1437
    // Predicated region
    $region38: #{tpu_custom_call.1} parent=1 // pred_check
      _
    $region39: #{tpu_custom_call.1} parent=1 // pred_check_branch
      %1442 = sbr.rel (0) target = $region41
    $region40: #{tpu_custom_call.1} parent=1 // pred_region
      %s1444 = ssub.s32 1024, 1024
      %1445 = vsyncadd [#allocation3], %s1444
      %s1446 = sshll.u32 [#allocation2], 4
      %s1447 = int_to_ptr.vmem [resolvable:$true] %s1446
      %1452 = dma.vmem_to_hbm [thread:$0]  %s1447, 1024, %s9, [#allocation3], 128, 128, 8
    $region41: #{tpu_custom_call.1} parent=1 // pred_fallthru
      _
    // Predicated region
    $region42: #{tpu_custom_call.1} parent=1 // pred_check
      _
    $region43: #{tpu_custom_call.1} parent=1 // pred_check_branch
      %1454 = sbr.rel (0) target = $region45
    $region44: #{tpu_custom_call.1} parent=1 // pred_region
      %1455 = dma.done [#allocation3], 1024
    $region45: #{tpu_custom_call.1} parent=1 // pred_fallthru
      _
    %1456 = vsyncpa [#allocation3], 1

</llo_original>
